<compile_context>
chip_gen: v7x
topology: tpu7x:2x2x1
jax: 0.10.0
libtpu: 0.0.40
codegen_flags: <defaults>
</compile_context>

<pallas_src>
import jax
import jax.numpy as jnp
from jax.experimental import pallas as pl
from jax.experimental.pallas import tpu as pltpu

EPS = 1e-5


def _phase_tap_table(kernel_size):
    """For output parity r and tap t: input position 2q+r+t-p == 2*(q+u) + v."""
    p = kernel_size // 2
    table = []
    for r in range(2):
        row = []
        for t in range(kernel_size):
            s = r + t - p
            u = s // 2            # floor division (negative-safe)
            v = s - 2 * u         # 0 or 1
            row.append((u, v))
        table.append(tuple(row))
    return tuple(table), p


def _round_up(x, m):
    return ((x + m - 1) // m) * m


def decoder_block(x, skip, params, *, lanes_per_step=1024,
                  compute_dtype=jnp.float32):
    """x: (N, C, L); skip: (N, C, 2L).  Returns (N, C_out, 2L) float32."""
    n, c_in, l_in = x.shape
    m_len = 2 * l_in
    assert skip.shape == (n, c_in, m_len)

    w1 = params["w1"]                       # (C_mid, 2C, K)
    w2 = params["w2"]                       # (C_out, C_mid, K)
    c_mid, c1_in, k = w1.shape
    c_out = w2.shape[0]
    assert c1_in == 2 * c_in
    assert k % 2 == 1, "odd kernel_size assumed (same-length padding)"

    taps, p = _phase_tap_table(k)
    hp = (p + 1) // 2                       # per-phase halo covering all tap shifts
    # roll-wrap safety (review correctness concern): every tap shift fits the halo.
    assert max(abs(u) for row in taps for (u, _) in row) <= hp

    lq = l_in                               # per-phase valid length
    lpb = _round_up(lq + 2 * hp, 128)       # per-batch segment, lane aligned
    nf = n * lpb                            # flat slab width (128 multiple)

    # Whole zero-padded segments per grid step (bn must divide n -> no partial tiles).
    bn = max(1, min(n, lanes_per_step // lpb))
    while n % bn:
        bn -= 1
    tl = bn * lpb
    n_tiles = nf // tl

    f32 = jnp.float32
    dt = compute_dtype
    bn_count = float(n * m_len)             # BatchNorm averages over N and 2L

    # ---------------- wrapper-side layout glue (inputs / weights only) ------------
    def to_slab(a):                         # (N, rows, Lq) -> (rows, nf)
        a = jnp.transpose(a, (1, 0, 2))                       # (rows, N, Lq)
        a = jnp.pad(a, ((0, 0), (0, 0), (hp, lpb - lq - hp))) # per-segment zero halos
        return a.reshape(a.shape[0], nf).astype(dt)

    # x slab + extra all-ones "valid" row so the tconv bias is applied by the matmul
    # itself (bias only in valid columns -> halo columns stay exactly zero).
    xf = to_slab(jnp.concatenate(
        [x.astype(f32), jnp.ones((n, 1, lq), f32)], axis=1))              # (C+1, nf)

    # skip: one reshape + transpose + pad (no strided slices / per-phase stacks).
    skf = jnp.transpose(skip.astype(f32).reshape(n, c_in, lq, 2), (3, 1, 0, 2))
    skf = jnp.pad(skf, ((0, 0), (0, 0), (0, 0), (hp, lpb - lq - hp)))
    skf = skf.reshape(2, c_in, nf).astype(dt)                             # (2, C, nf)

    # Transposed-conv weights, per phase, augmented with the bias column.
    wt = params["wt"].astype(f32)                                         # (in, out, 2)
    wtp = jnp.transpose(wt, (2, 1, 0))                                    # (2, out, in)
    bt_col = jnp.broadcast_to(params["bt"].astype(f32).reshape(1, c_in, 1),
                              (2, c_in, 1))
    wt_aug = jnp.concatenate([wtp, bt_col], axis=2).astype(dt)            # (2, C, C+1)

    # Conv weights split per tap and per source so the kernel accumulates partial
    # matmuls instead of materializing (K*C, nf) im2col slabs / sublane concats.
    w1a = jnp.transpose(w1[:, :c_in, :], (2, 0, 1)).astype(dt)   # (K, C_mid, C)  tconv part
    w1b = jnp.transpose(w1[:, c_in:, :], (2, 0, 1)).astype(dt)   # (K, C_mid, C)  skip part
    w2s = jnp.transpose(w2, (2, 0, 1)).astype(dt)                # (K, C_out, C_mid)

    # NOTE: conv biases b1 / b2 are exact no-ops here: each Conv1d feeds a
    # training-mode BatchNorm whose mean subtraction cancels any per-channel
    # constant over the (N, L) statistics domain, so they are not loaded at all.
    g1 = params["g1"].reshape(c_mid, 1).astype(f32)
    be1 = params["be1"].reshape(c_mid, 1).astype(f32)
    g2 = params["g2"].reshape(c_out, 1).astype(f32)
    be2 = params["be2"].reshape(c_out, 1).astype(f32)

    # ---------------------------- the fused kernel --------------------------------
    def kernel(xf_ref, skf_ref, wt_ref, w1a_ref, w1b_ref, w2_ref,
               g1_ref, be1_ref, g2_ref, be2_ref,
               oute_ref, outo_ref,
               s1_ref, q1_ref, s2_ref, q2_ref):
        pass_id = pl.program_id(0)
        tile_id = pl.program_id(1)

        @pl.when(jnp.logical_and(pass_id == 0, tile_id == 0))
        def _init():
            s1_ref[...] = jnp.zeros_like(s1_ref)
            q1_ref[...] = jnp.zeros_like(q1_ref)
            s2_ref[...] = jnp.zeros_like(s2_ref)
            q2_ref[...] = jnp.zeros_like(q2_ref)

        # 0/1 mask of real (non-halo) columns; identical for every tile because each
        # tile holds whole zero-padded per-batch segments.
        cols = jax.lax.broadcasted_iota(jnp.int32, (1, tl), 1) % lpb
        valid = jnp.logical_and(cols >= hp, cols < hp + lq).astype(f32)

        def shift_cols(a, u):
            # shifted[:, j] = a[:, j + u] as a lane rotation (XLU slot, no copies).
            # Wrapped columns only land in halo / pad columns (|u| <= hp), whose
            # downstream contributions are masked out.
            if u == 0:
                return a
            return pltpu.roll(a, shift=(-u) % tl, axis=1)

        def conv_taps(sources, r):
            # sources: list of (weight_ref (K, C_o, C_i), [phase0, phase1]) pairs.
            acc = None
            for t, (u, v) in enumerate(taps[r]):
                for w_ref, phases in sources:
                    term = jnp.dot(w_ref[t], shift_cols(phases[v], u),
                                   preferred_element_type=f32)
                    acc = term if acc is None else acc + term
            return acc

        # --- transposed conv: one matmul per phase; bias rides the ones row -------
        xfv = xf_ref[...]
        yt = [jnp.dot(wt_ref[r], xfv, preferred_element_type=f32).astype(dt)
              for r in range(2)]
        sk = [skf_ref[0], skf_ref[1]]

        # --- conv1 as accumulated per-tap / per-source partial matmuls ------------
        h1 = [conv_taps([(w1a_ref, yt), (w1b_ref, sk)], r) for r in range(2)]

        @pl.when(pass_id == 0)              # pass 0: BN1 batch statistics
        def _bn1_stats():
            for r in range(2):
                hv = h1[r] * valid
                s1_ref[...] += jnp.sum(hv, axis=1, keepdims=True)
                q1_ref[...] += jnp.sum(hv * hv, axis=1, keepdims=True)

        @pl.when(pass_id >= 1)
        def _apply():
            inv_cnt = 1.0 / bn_count
            mean1 = s1_ref[...] * inv_cnt
            var1 = q1_ref[...] * inv_cnt - mean1 * mean1    # biased (training) var
            sc1 = g1_ref[...] * jax.lax.rsqrt(var1 + EPS)
            of1 = be1_ref[...] - mean1 * sc1
            # normalize + affine + ReLU; re-zero halos (= conv2 zero padding)
            a1 = [(jnp.maximum(h1[r] * sc1 + of1, 0.0) * valid).astype(dt)
                  for r in range(2)]
            h2 = [conv_taps([(w2_ref, a1)], r) for r in range(2)]

            @pl.when(pass_id == 1)          # pass 1: BN2 batch statistics
            def _bn2_stats():
                for r in range(2):
                    hv = h2[r] * valid
                    s2_ref[...] += jnp.sum(hv, axis=1, keepdims=True)
                    q2_ref[...] += jnp.sum(hv * hv, axis=1, keepdims=True)

            @pl.when(pass_id == 2)          # pass 2: BN2 + ReLU, lane-dense stores
            def _write():
                mean2 = s2_ref[...] * inv_cnt
                var2 = q2_ref[...] * inv_cnt - mean2 * mean2
                sc2 = g2_ref[...] * jax.lax.rsqrt(var2 + EPS)
                of2 = be2_ref[...] - mean2 * sc2
                oute_ref[...] = jnp.maximum(h2[0] * sc2 + of2, 0.0)
                outo_ref[...] = jnp.maximum(h2[1] * sc2 + of2, 0.0)

    # Scoped-VMEM limit sized to the per-step footprint (headroom, capped for v7x).
    rows_resident = (2 * ((c_in + 1) + 2 * c_in + 2 * c_out)       # dbl-buffered I/O
                     + 2 * c_in + 4 * c_mid + 2 * c_out            # yt, h1, a1, h2
                     + 4 * max(c_in, c_mid, c_out))                # shift/stat temps
    vmem_est = 4 * rows_resident * tl
    vmem_limit = int(min(64 << 20, max(32 << 20, 4 * vmem_est)))

    oute, outo = pl.pallas_call(
        kernel,
        out_shape=(jax.ShapeDtypeStruct((c_out, nf), f32),
                   jax.ShapeDtypeStruct((c_out, nf), f32)),
        grid=(3, n_tiles),
        in_specs=[
            pl.BlockSpec((c_in + 1, tl), lambda s, j: (0, j)),
            pl.BlockSpec((2, c_in, tl), lambda s, j: (0, 0, j)),
            pl.BlockSpec((2, c_in, c_in + 1), lambda s, j: (0, 0, 0)),
            pl.BlockSpec((k, c_mid, c_in), lambda s, j: (0, 0, 0)),
            pl.BlockSpec((k, c_mid, c_in), lambda s, j: (0, 0, 0)),
            pl.BlockSpec((k, c_out, c_mid), lambda s, j: (0, 0, 0)),
            pl.BlockSpec((c_mid, 1), lambda s, j: (0, 0)),
            pl.BlockSpec((c_mid, 1), lambda s, j: (0, 0)),
            pl.BlockSpec((c_out, 1), lambda s, j: (0, 0)),
            pl.BlockSpec((c_out, 1), lambda s, j: (0, 0)),
        ],
        out_specs=(pl.BlockSpec((c_out, tl), lambda s, j: (0, j)),
                   pl.BlockSpec((c_out, tl), lambda s, j: (0, j))),
        scratch_shapes=[pltpu.VMEM((c_mid, 1), f32), pltpu.VMEM((c_mid, 1), f32),
                        pltpu.VMEM((c_out, 1), f32), pltpu.VMEM((c_out, 1), f32)],
        compiler_params=pltpu.CompilerParams(
            dimension_semantics=("arbitrary", "arbitrary"),
            vmem_limit_bytes=vmem_limit),
    )(xf, skf, wt_aug, w1a, w1b, w2s, g1, be1, g2, be2)

    # -------- output layout glue: drop halos, interleave even/odd phases ----------
    ph = jnp.stack([oute, outo], axis=0).reshape(2, c_out, n, lpb)[:, :, :, hp:hp + lq]
    out = jnp.transpose(ph, (2, 1, 3, 0)).reshape(n, c_out, m_len)
    return out


# ------------------------------------------------------------------------------
# Pure-JAX reference (independent lax.conv path) for verification
# ------------------------------------------------------------------------------
def reference(x, skip, params):
    n, c, l = x.shape
    wt, bt = params["wt"], params["bt"]
    y_even = jnp.einsum("nil,io->nol", x, wt[:, :, 0]) + bt[None, :, None]
    y_odd = jnp.einsum("nil,io->nol", x, wt[:, :, 1]) + bt[None, :, None]
    yt = jnp.zeros((n, c, 2 * l), jnp.float32)
    yt = yt.at[:, :, 0::2].set(y_even).at[:, :, 1::2].set(y_odd)
    cat = jnp.concatenate([yt, skip], axis=1)

    def conv1d(a, w, b, pad):
        y = jax.lax.conv_general_dilated(
            a, w, window_strides=(1,), padding=[(pad, pad)],
            dimension_numbers=("NCH", "OIH", "NCH"))
        return y + b[None, :, None]

    def bn_relu(a, g, be):
        m = jnp.mean(a, axis=(0, 2), keepdims=True)
        v = jnp.mean((a - m) ** 2, axis=(0, 2), keepdims=True)
        return jax.nn.relu(g[None, :, None] * (a - m) / jnp.sqrt(v + EPS)
                           + be[None, :, None])

    k = params["w1"].shape[-1]
    h = bn_relu(conv1d(cat, params["w1"], params["b1"], k // 2),
                params["g1"], params["be1"])
    return bn_relu(conv1d(h, params["w2"], params["b2"], k // 2),
                   params["g2"], params["be2"])


if __name__ == "__main__":
    f32 = jnp.float32

    def make_params(key, c_in, c_out, k):
        ks = jax.random.split(key, 10)
        return {
            "wt": 0.2 * jax.random.normal(ks[0], (c_in, c_in, 2), f32),
            "bt": 0.1 * jax.random.normal(ks[1], (c_in,), f32),
            "w1": 0.2 * jax.random.normal(ks[2], (c_in, 2 * c_in, k), f32),
            "b1": 0.1 * jax.random.normal(ks[3], (c_in,), f32),
            "g1": 1.0 + 0.1 * jax.random.normal(ks[4], (c_in,), f32),
            "be1": 0.1 * jax.random.normal(ks[5], (c_in,), f32),
            "w2": 0.2 * jax.random.normal(ks[6], (c_out, c_in, k), f32),
            "b2": 0.1 * jax.random.normal(ks[7], (c_out,), f32),
            "g2": 1.0 + 0.1 * jax.random.normal(ks[8], (c_out,), f32),
            "be2": 0.1 * jax.random.normal(ks[9], (c_out,), f32),
        }

    root = jax.random.PRNGKey(0)
    k1, k2, k3, k4, k5, k6 = jax.random.split(root, 6)

    # Case 1: the spec's small shape -> single-tile grid (3 passes x 1 tile).
    N, C_IN, C_OUT, K, L = 2, 4, 6, 3, 8
    params = make_params(k1, C_IN, C_OUT, K)
    x = jax.random.normal(k2, (N, C_IN, L), f32)
    skip = jax.random.normal(k3, (N, C_IN, 2 * L), f32)
    out = jax.block_until_ready(decoder_block(x, skip, params))
    ref = jax.block_until_ready(reference(x, skip, params))
    assert out.shape == (N, C_OUT, 2 * L), out.shape
    err = float(jnp.max(jnp.abs(out - ref)))
    assert err < 2e-4, f"case1 mismatch vs reference: {err}"

    # Case 2: multi-tile grid (3 passes x 4 tiles), wider conv; f32 and bf16 slabs.
    N, C_IN, C_OUT, K, L = 4, 8, 6, 5, 100
    params = make_params(k4, C_IN, C_OUT, K)
    x = jax.random.normal(k5, (N, C_IN, L), f32)
    skip = jax.random.normal(k6, (N, C_IN, 2 * L), f32)
    ref = jax.block_until_ready(reference(x, skip, params))
    out = jax.block_until_ready(decoder_block(x, skip, params, lanes_per_step=128))
    err = float(jnp.max(jnp.abs(out - ref)))
    assert err < 5e-4, f"case2 f32 mismatch vs reference: {err}"
    out_bf = jax.block_until_ready(
        decoder_block(x, skip, params, lanes_per_step=128,
                      compute_dtype=jnp.bfloat16))
    err_bf = float(jnp.max(jnp.abs(out_bf - ref)))
    assert err_bf < 8e-2, f"case2 bf16 mismatch vs reference: {err_bf}"

    print("KERNEL_OK")
</pallas_src>

<mosaic_0001>
module attributes {stable_mosaic.version = 11 : i64} {
  func.func @kernel(%arg0: i32, %arg1: i32, %arg2: memref<5x256xf32, #tpu.memory_space<vmem>>, %arg3: memref<2x4x256xf32, #tpu.memory_space<vmem>>, %arg4: memref<2x4x5xf32, #tpu.memory_space<vmem>>, %arg5: memref<3x4x4xf32, #tpu.memory_space<vmem>>, %arg6: memref<3x4x4xf32, #tpu.memory_space<vmem>>, %arg7: memref<3x6x4xf32, #tpu.memory_space<vmem>>, %arg8: memref<4x1xf32, #tpu.memory_space<vmem>>, %arg9: memref<4x1xf32, #tpu.memory_space<vmem>>, %arg10: memref<6x1xf32, #tpu.memory_space<vmem>>, %arg11: memref<6x1xf32, #tpu.memory_space<vmem>>, %arg12: memref<6x256xf32, #tpu.memory_space<vmem>>, %arg13: memref<6x256xf32, #tpu.memory_space<vmem>>, %arg14: memref<4x1xf32, #tpu.memory_space<vmem>>, %arg15: memref<4x1xf32, #tpu.memory_space<vmem>>, %arg16: memref<6x1xf32, #tpu.memory_space<vmem>>, %arg17: memref<6x1xf32, #tpu.memory_space<vmem>>) attributes {dimension_semantics = [#tpu.dimension_semantics<arbitrary>, #tpu.dimension_semantics<arbitrary>], iteration_bounds = array<i64: 3, 1>, scalar_prefetch = 0 : i64, scratch_operands = 4 : i64, tpu.core_type = #tpu.core_type<tc>, window_params = [{transform_indices = @transform_0, window_bounds = array<i64: 5, 256>}, {transform_indices = @transform_1, window_bounds = array<i64: 2, 4, 256>}, {pipeline_mode = #tpu.pipeline_mode<synchronous>, transform_indices = @transform_2, window_bounds = array<i64: 2, 4, 5>}, {pipeline_mode = #tpu.pipeline_mode<synchronous>, transform_indices = @transform_3, window_bounds = array<i64: 3, 4, 4>}, {pipeline_mode = #tpu.pipeline_mode<synchronous>, transform_indices = @transform_4, window_bounds = array<i64: 3, 4, 4>}, {pipeline_mode = #tpu.pipeline_mode<synchronous>, transform_indices = @transform_5, window_bounds = array<i64: 3, 6, 4>}, {pipeline_mode = #tpu.pipeline_mode<synchronous>, transform_indices = @transform_6, window_bounds = array<i64: 4, 1>}, {pipeline_mode = #tpu.pipeline_mode<synchronous>, transform_indices = @transform_7, window_bounds = array<i64: 4, 1>}, {pipeline_mode = #tpu.pipeline_mode<synchronous>, transform_indices = @transform_8, window_bounds = array<i64: 6, 1>}, {pipeline_mode = #tpu.pipeline_mode<synchronous>, transform_indices = @transform_9, window_bounds = array<i64: 6, 1>}, {transform_indices = @transform_10, window_bounds = array<i64: 6, 256>}, {transform_indices = @transform_11, window_bounds = array<i64: 6, 256>}]} {
    %c0_i32 = arith.constant 0 : i32
    %0 = arith.cmpi eq, %arg0, %c0_i32 : i32
    %c0_i32_0 = arith.constant 0 : i32
    %1 = arith.cmpi eq, %arg1, %c0_i32_0 : i32
    %2 = arith.andi %0, %1 : i1
    %3 = arith.extui %2 : i1 to i32
    %c0_i32_1 = arith.constant 0 : i32
    %4 = arith.cmpi ne, %3, %c0_i32_1 : i32
    scf.if %4 {
      %cst_74 = arith.constant 0.000000e+00 : f32
      %96 = vector.broadcast %cst_74 : f32 to vector<4x1xf32>
      %c0_75 = arith.constant 0 : index
      %c0_76 = arith.constant 0 : index
      %97 = vector.load %arg14[%c0_75, %c0_76] : memref<4x1xf32, #tpu.memory_space<vmem>>, vector<4x1xf32>
      tpu.vector_store %arg14[%c0_75, %c0_76], %96 {strides = array<i32>} : memref<4x1xf32, #tpu.memory_space<vmem>>, vector<4x1xf32>,
      %cst_77 = arith.constant 0.000000e+00 : f32
      %98 = vector.broadcast %cst_77 : f32 to vector<4x1xf32>
      %c0_78 = arith.constant 0 : index
      %c0_79 = arith.constant 0 : index
      %99 = vector.load %arg15[%c0_78, %c0_79] : memref<4x1xf32, #tpu.memory_space<vmem>>, vector<4x1xf32>
      tpu.vector_store %arg15[%c0_78, %c0_79], %98 {strides = array<i32>} : memref<4x1xf32, #tpu.memory_space<vmem>>, vector<4x1xf32>,
      %cst_80 = arith.constant 0.000000e+00 : f32
      %100 = vector.broadcast %cst_80 : f32 to vector<6x1xf32>
      %c0_81 = arith.constant 0 : index
      %c0_82 = arith.constant 0 : index
      %101 = vector.load %arg16[%c0_81, %c0_82] : memref<6x1xf32, #tpu.memory_space<vmem>>, vector<6x1xf32>
      tpu.vector_store %arg16[%c0_81, %c0_82], %100 {strides = array<i32>} : memref<6x1xf32, #tpu.memory_space<vmem>>, vector<6x1xf32>,
      %cst_83 = arith.constant 0.000000e+00 : f32
      %102 = vector.broadcast %cst_83 : f32 to vector<6x1xf32>
      %c0_84 = arith.constant 0 : index
      %c0_85 = arith.constant 0 : index
      %103 = vector.load %arg17[%c0_84, %c0_85] : memref<6x1xf32, #tpu.memory_space<vmem>>, vector<6x1xf32>
      tpu.vector_store %arg17[%c0_84, %c0_85], %102 {strides = array<i32>} : memref<6x1xf32, #tpu.memory_space<vmem>>, vector<6x1xf32>,
    } else {
    }
    %5 = tpu.iota {dimensions = array<i32: 1>} : vector<1x256xi32>
    %c128_i32 = arith.constant 128 : i32
    %c0_i32_2 = arith.constant 0 : i32
    %6 = arith.cmpi eq, %c128_i32, %c0_i32_2 : i32
    %c1_i32 = arith.constant 1 : i32
    %7 = arith.select %6, %c1_i32, %c128_i32 : i32
    %8 = vector.broadcast %7 : i32 to vector<1x256xi32>
    %9 = arith.remsi %5, %8 : vector<1x256xi32>
    %c0_i32_3 = arith.constant 0 : i32
    %10 = vector.broadcast %c0_i32_3 : i32 to vector<1x256xi32>
    %11 = arith.cmpi ne, %9, %10 : vector<1x256xi32>
    %c0_i32_4 = arith.constant 0 : i32
    %12 = vector.broadcast %c0_i32_4 : i32 to vector<1x256xi32>
    %13 = arith.cmpi slt, %9, %12 : vector<1x256xi32>
    %c0_i32_5 = arith.constant 0 : i32
    %14 = arith.cmpi slt, %7, %c0_i32_5 : i32
    %15 = vector.broadcast %14 : i1 to vector<1x256xi1>
    %16 = vector.broadcast %15 : vector<1x256xi1> to vector<1x256xi1>
    %17 = arith.xori %13, %16 : vector<1x256xi1>
    %18 = arith.andi %17, %11 : vector<1x256xi1>
    %19 = vector.broadcast %7 : i32 to vector<1x256xi32>
    %20 = arith.addi %9, %19 : vector<1x256xi32>
    %21 = arith.select %18, %20, %9 : vector<1x256xi1>, vector<1x256xi32>
    %c1_i32_6 = arith.constant 1 : i32
    %22 = vector.broadcast %c1_i32_6 : i32 to vector<1x256xi32>
    %23 = arith.cmpi sge, %21, %22 : vector<1x256xi32>
    %c9_i32 = arith.constant 9 : i32
    %24 = vector.broadcast %c9_i32 : i32 to vector<1x256xi32>
    %25 = arith.cmpi slt, %21, %24 : vector<1x256xi32>
    %26 = arith.andi %23, %25 : vector<1x256xi1>
    %27 = arith.extui %26 : vector<1x256xi1> to vector<1x256xi32>
    %28 = arith.sitofp %27 : vector<1x256xi32> to vector<1x256xf32>
    %c0 = arith.constant 0 : index
    %c0_7 = arith.constant 0 : index
    %29 = vector.load %arg2[%c0, %c0_7] : memref<5x256xf32, #tpu.memory_space<vmem>>, vector<5x256xf32>
    %c0_8 = arith.constant 0 : index
    %c0_9 = arith.constant 0 : index
    %c0_10 = arith.constant 0 : index
    %30 = vector.load %arg4[%c0_8, %c0_9, %c0_10] : memref<2x4x5xf32, #tpu.memory_space<vmem>>, vector<1x4x5xf32>
    %31 = vector.shape_cast %30 : vector<1x4x5xf32> to vector<4x5xf32>
    %cst = arith.constant dense<0.000000e+00> : vector<4x256xf32>
    %32 = tpu.matmul %31, %29, %cst {dimension_numbers = #tpu.dot_dimension_numbers<[1], [0], [0], [1], [0, 0, 1, 1], [], []>} : vector<4x5xf32>, vector<5x256xf32>, vector<4x256xf32> -> vector<4x256xf32>
    %c1 = arith.constant 1 : index
    %c0_11 = arith.constant 0 : index
    %c0_12 = arith.constant 0 : index
    %33 = vector.load %arg4[%c1, %c0_11, %c0_12] : memref<2x4x5xf32, #tpu.memory_space<vmem>>, vector<1x4x5xf32>
    %34 = vector.shape_cast %33 : vector<1x4x5xf32> to vector<4x5xf32>
    %cst_13 = arith.constant dense<0.000000e+00> : vector<4x256xf32>
    %35 = tpu.matmul %34, %29, %cst_13 {dimension_numbers = #tpu.dot_dimension_numbers<[1], [0], [0], [1], [0, 0, 1, 1], [], []>} : vector<4x5xf32>, vector<5x256xf32>, vector<4x256xf32> -> vector<4x256xf32>
    %c0_14 = arith.constant 0 : index
    %c0_15 = arith.constant 0 : index
    %c0_16 = arith.constant 0 : index
    %36 = vector.load %arg3[%c0_14, %c0_15, %c0_16] : memref<2x4x256xf32, #tpu.memory_space<vmem>>, vector<1x4x256xf32>
    %37 = vector.shape_cast %36 : vector<1x4x256xf32> to vector<4x256xf32>
    %c1_17 = arith.constant 1 : index
    %c0_18 = arith.constant 0 : index
    %c0_19 = arith.constant 0 : index
    %38 = vector.load %arg3[%c1_17, %c0_18, %c0_19] : memref<2x4x256xf32, #tpu.memory_space<vmem>>, vector<1x4x256xf32>
    %39 = vector.shape_cast %38 : vector<1x4x256xf32> to vector<4x256xf32>
    %c0_20 = arith.constant 0 : index
    %c0_21 = arith.constant 0 : index
    %c0_22 = arith.constant 0 : index
    %40 = vector.load %arg5[%c0_20, %c0_21, %c0_22] : memref<3x4x4xf32, #tpu.memory_space<vmem>>, vector<1x4x4xf32>
    %41 = vector.shape_cast %40 : vector<1x4x4xf32> to vector<4x4xf32>
    %c1_i32_23 = arith.constant 1 : i32
    %42 = tpu.dynamic_rotate %35 by %c1_i32_23 dim 1 : vector<4x256xf32>, i32 -> vector<4x256xf32>
    %cst_24 = arith.constant dense<0.000000e+00> : vector<4x256xf32>
    %43 = tpu.matmul %41, %42, %cst_24 {dimension_numbers = #tpu.dot_dimension_numbers<[1], [0], [0], [1], [0, 0, 1, 1], [], []>} : vector<4x4xf32>, vector<4x256xf32>, vector<4x256xf32> -> vector<4x256xf32>
    %c0_25 = arith.constant 0 : index
    %c0_26 = arith.constant 0 : index
    %c0_27 = arith.constant 0 : index
    %44 = vector.load %arg6[%c0_25, %c0_26, %c0_27] : memref<3x4x4xf32, #tpu.memory_space<vmem>>, vector<1x4x4xf32>
    %45 = vector.shape_cast %44 : vector<1x4x4xf32> to vector<4x4xf32>
    %c1_i32_28 = arith.constant 1 : i32
    %46 = tpu.dynamic_rotate %39 by %c1_i32_28 dim 1 : vector<4x256xf32>, i32 -> vector<4x256xf32>
    %cst_29 = arith.constant dense<0.000000e+00> : vector<4x256xf32>
    %47 = tpu.matmul %45, %46, %cst_29 {dimension_numbers = #tpu.dot_dimension_numbers<[1], [0], [0], [1], [0, 0, 1, 1], [], []>} : vector<4x4xf32>, vector<4x256xf32>, vector<4x256xf32> -> vector<4x256xf32>
    %48 = arith.addf %43, %47 : vector<4x256xf32>
    %c1_30 = arith.constant 1 : index
    %c0_31 = arith.constant 0 : index
    %c0_32 = arith.constant 0 : index
    %49 = vector.load %arg5[%c1_30, %c0_31, %c0_32] : memref<3x4x4xf32, #tpu.memory_space<vmem>>, vector<1x4x4xf32>
    %50 = vector.shape_cast %49 : vector<1x4x4xf32> to vector<4x4xf32>
    %cst_33 = arith.constant dense<0.000000e+00> : vector<4x256xf32>
    %51 = tpu.matmul %50, %32, %cst_33 {dimension_numbers = #tpu.dot_dimension_numbers<[1], [0], [0], [1], [0, 0, 1, 1], [], []>} : vector<4x4xf32>, vector<4x256xf32>, vector<4x256xf32> -> vector<4x256xf32>
    %52 = arith.addf %48, %51 : vector<4x256xf32>
    %c1_34 = arith.constant 1 : index
    %c0_35 = arith.constant 0 : index
    %c0_36 = arith.constant 0 : index
    %53 = vector.load %arg6[%c1_34, %c0_35, %c0_36] : memref<3x4x4xf32, #tpu.memory_space<vmem>>, vector<1x4x4xf32>
    %54 = vector.shape_cast %53 : vector<1x4x4xf32> to vector<4x4xf32>
    %cst_37 = arith.constant dense<0.000000e+00> : vector<4x256xf32>
    %55 = tpu.matmul %54, %37, %cst_37 {dimension_numbers = #tpu.dot_dimension_numbers<[1], [0], [0], [1], [0, 0, 1, 1], [], []>} : vector<4x4xf32>, vector<4x256xf32>, vector<4x256xf32> -> vector<4x256xf32>
    %56 = arith.addf %52, %55 : vector<4x256xf32>
    %c2 = arith.constant 2 : index
    %c0_38 = arith.constant 0 : index
    %c0_39 = arith.constant 0 : index
    %57 = vector.load %arg5[%c2, %c0_38, %c0_39] : memref<3x4x4xf32, #tpu.memory_space<vmem>>, vector<1x4x4xf32>
    %58 = vector.shape_cast %57 : vector<1x4x4xf32> to vector<4x4xf32>
    %cst_40 = arith.constant dense<0.000000e+00> : vector<4x256xf32>
    %59 = tpu.matmul %58, %35, %cst_40 {dimension_numbers = #tpu.dot_dimension_numbers<[1], [0], [0], [1], [0, 0, 1, 1], [], []>} : vector<4x4xf32>, vector<4x256xf32>, vector<4x256xf32> -> vector<4x256xf32>
    %60 = arith.addf %56, %59 : vector<4x256xf32>
    %c2_41 = arith.constant 2 : index
    %c0_42 = arith.constant 0 : index
    %c0_43 = arith.constant 0 : index
    %61 = vector.load %arg6[%c2_41, %c0_42, %c0_43] : memref<3x4x4xf32, #tpu.memory_space<vmem>>, vector<1x4x4xf32>
    %62 = vector.shape_cast %61 : vector<1x4x4xf32> to vector<4x4xf32>
    %cst_44 = arith.constant dense<0.000000e+00> : vector<4x256xf32>
    %63 = tpu.matmul %62, %39, %cst_44 {dimension_numbers = #tpu.dot_dimension_numbers<[1], [0], [0], [1], [0, 0, 1, 1], [], []>} : vector<4x4xf32>, vector<4x256xf32>, vector<4x256xf32> -> vector<4x256xf32>
    %64 = arith.addf %60, %63 : vector<4x256xf32>
    %c0_45 = arith.constant 0 : index
    %c0_46 = arith.constant 0 : index
    %c0_47 = arith.constant 0 : index
    %65 = vector.load %arg5[%c0_45, %c0_46, %c0_47] : memref<3x4x4xf32, #tpu.memory_space<vmem>>, vector<1x4x4xf32>
    %66 = vector.shape_cast %65 : vector<1x4x4xf32> to vector<4x4xf32>
    %cst_48 = arith.constant dense<0.000000e+00> : vector<4x256xf32>
    %67 = tpu.matmul %66, %32, %cst_48 {dimension_numbers = #tpu.dot_dimension_numbers<[1], [0], [0], [1], [0, 0, 1, 1], [], []>} : vector<4x4xf32>, vector<4x256xf32>, vector<4x256xf32> -> vector<4x256xf32>
    %c0_49 = arith.constant 0 : index
    %c0_50 = arith.constant 0 : index
    %c0_51 = arith.constant 0 : index
    %68 = vector.load %arg6[%c0_49, %c0_50, %c0_51] : memref<3x4x4xf32, #tpu.memory_space<vmem>>, vector<1x4x4xf32>
    %69 = vector.shape_cast %68 : vector<1x4x4xf32> to vector<4x4xf32>
    %cst_52 = arith.constant dense<0.000000e+00> : vector<4x256xf32>
    %70 = tpu.matmul %69, %37, %cst_52 {dimension_numbers = #tpu.dot_dimension_numbers<[1], [0], [0], [1], [0, 0, 1, 1], [], []>} : vector<4x4xf32>, vector<4x256xf32>, vector<4x256xf32> -> vector<4x256xf32>
    %71 = arith.addf %67, %70 : vector<4x256xf32>
    %c1_53 = arith.constant 1 : index
    %c0_54 = arith.constant 0 : index
    %c0_55 = arith.constant 0 : index
    %72 = vector.load %arg5[%c1_53, %c0_54, %c0_55] : memref<3x4x4xf32, #tpu.memory_space<vmem>>, vector<1x4x4xf32>
    %73 = vector.shape_cast %72 : vector<1x4x4xf32> to vector<4x4xf32>
    %cst_56 = arith.constant dense<0.000000e+00> : vector<4x256xf32>
    %74 = tpu.matmul %73, %35, %cst_56 {dimension_numbers = #tpu.dot_dimension_numbers<[1], [0], [0], [1], [0, 0, 1, 1], [], []>} : vector<4x4xf32>, vector<4x256xf32>, vector<4x256xf32> -> vector<4x256xf32>
    %75 = arith.addf %71, %74 : vector<4x256xf32>
    %c1_57 = arith.constant 1 : index
    %c0_58 = arith.constant 0 : index
    %c0_59 = arith.constant 0 : index
    %76 = vector.load %arg6[%c1_57, %c0_58, %c0_59] : memref<3x4x4xf32, #tpu.memory_space<vmem>>, vector<1x4x4xf32>
    %77 = vector.shape_cast %76 : vector<1x4x4xf32> to vector<4x4xf32>
    %cst_60 = arith.constant dense<0.000000e+00> : vector<4x256xf32>
    %78 = tpu.matmul %77, %39, %cst_60 {dimension_numbers = #tpu.dot_dimension_numbers<[1], [0], [0], [1], [0, 0, 1, 1], [], []>} : vector<4x4xf32>, vector<4x256xf32>, vector<4x256xf32> -> vector<4x256xf32>
    %79 = arith.addf %75, %78 : vector<4x256xf32>
    %c2_61 = arith.constant 2 : index
    %c0_62 = arith.constant 0 : index
    %c0_63 = arith.constant 0 : index
    %80 = vector.load %arg5[%c2_61, %c0_62, %c0_63] : memref<3x4x4xf32, #tpu.memory_space<vmem>>, vector<1x4x4xf32>
    %81 = vector.shape_cast %80 : vector<1x4x4xf32> to vector<4x4xf32>
    %c255_i32 = arith.constant 255 : i32
    %82 = tpu.dynamic_rotate %32 by %c255_i32 dim 1 : vector<4x256xf32>, i32 -> vector<4x256xf32>
    %cst_64 = arith.constant dense<0.000000e+00> : vector<4x256xf32>
    %83 = tpu.matmul %81, %82, %cst_64 {dimension_numbers = #tpu.dot_dimension_numbers<[1], [0], [0], [1], [0, 0, 1, 1], [], []>} : vector<4x4xf32>, vector<4x256xf32>, vector<4x256xf32> -> vector<4x256xf32>
    %84 = arith.addf %79, %83 : vector<4x256xf32>
    %c2_65 = arith.constant 2 : index
    %c0_66 = arith.constant 0 : index
    %c0_67 = arith.constant 0 : index
    %85 = vector.load %arg6[%c2_65, %c0_66, %c0_67] : memref<3x4x4xf32, #tpu.memory_space<vmem>>, vector<1x4x4xf32>
    %86 = vector.shape_cast %85 : vector<1x4x4xf32> to vector<4x4xf32>
    %c255_i32_68 = arith.constant 255 : i32
    %87 = tpu.dynamic_rotate %37 by %c255_i32_68 dim 1 : vector<4x256xf32>, i32 -> vector<4x256xf32>
    %cst_69 = arith.constant dense<0.000000e+00> : vector<4x256xf32>
    %88 = tpu.matmul %86, %87, %cst_69 {dimension_numbers = #tpu.dot_dimension_numbers<[1], [0], [0], [1], [0, 0, 1, 1], [], []>} : vector<4x4xf32>, vector<4x256xf32>, vector<4x256xf32> -> vector<4x256xf32>
    %89 = arith.addf %84, %88 : vector<4x256xf32>
    %c0_i32_70 = arith.constant 0 : i32
    %90 = arith.cmpi eq, %arg0, %c0_i32_70 : i32
    %91 = arith.extui %90 : i1 to i32
    %c0_i32_71 = arith.constant 0 : i32
    %92 = arith.cmpi ne, %91, %c0_i32_71 : i32
    scf.if %92 {
      %96 = vector.broadcast %28 : vector<1x256xf32> to vector<4x256xf32>
      %97 = arith.mulf %64, %96 : vector<4x256xf32>
      %c0_74 = arith.constant 0 : index
      %c0_75 = arith.constant 0 : index
      %98 = vector.load %arg14[%c0_74, %c0_75] : memref<4x1xf32, #tpu.memory_space<vmem>>, vector<4x1xf32>
      %cst_76 = arith.constant dense<0.000000e+00> : vector<4xf32>
      %99 = vector.multi_reduction <add>, %97, %cst_76 [1] : vector<4x256xf32> to vector<4xf32>
      %100 = vector.shape_cast %99 : vector<4xf32> to vector<4x1xf32>
      %101 = arith.addf %98, %100 : vector<4x1xf32>
      %c0_77 = arith.constant 0 : index
      %c0_78 = arith.constant 0 : index
      %102 = vector.load %arg14[%c0_77, %c0_78] : memref<4x1xf32, #tpu.memory_space<vmem>>, vector<4x1xf32>
      tpu.vector_store %arg14[%c0_77, %c0_78], %101 {strides = array<i32>} : memref<4x1xf32, #tpu.memory_space<vmem>>, vector<4x1xf32>,
      %c0_79 = arith.constant 0 : index
      %c0_80 = arith.constant 0 : index
      %103 = vector.load %arg15[%c0_79, %c0_80] : memref<4x1xf32, #tpu.memory_space<vmem>>, vector<4x1xf32>
      %104 = arith.mulf %97, %97 : vector<4x256xf32>
      %cst_81 = arith.constant dense<0.000000e+00> : vector<4xf32>
      %105 = vector.multi_reduction <add>, %104, %cst_81 [1] : vector<4x256xf32> to vector<4xf32>
      %106 = vector.shape_cast %105 : vector<4xf32> to vector<4x1xf32>
      %107 = arith.addf %103, %106 : vector<4x1xf32>
      %c0_82 = arith.constant 0 : index
      %c0_83 = arith.constant 0 : index
      %108 = vector.load %arg15[%c0_82, %c0_83] : memref<4x1xf32, #tpu.memory_space<vmem>>, vector<4x1xf32>
      tpu.vector_store %arg15[%c0_82, %c0_83], %107 {strides = array<i32>} : memref<4x1xf32, #tpu.memory_space<vmem>>, vector<4x1xf32>,
      %109 = vector.broadcast %28 : vector<1x256xf32> to vector<4x256xf32>
      %110 = arith.mulf %89, %109 : vector<4x256xf32>
      %c0_84 = arith.constant 0 : index
      %c0_85 = arith.constant 0 : index
      %111 = vector.load %arg14[%c0_84, %c0_85] : memref<4x1xf32, #tpu.memory_space<vmem>>, vector<4x1xf32>
      %cst_86 = arith.constant dense<0.000000e+00> : vector<4xf32>
      %112 = vector.multi_reduction <add>, %110, %cst_86 [1] : vector<4x256xf32> to vector<4xf32>
      %113 = vector.shape_cast %112 : vector<4xf32> to vector<4x1xf32>
      %114 = arith.addf %111, %113 : vector<4x1xf32>
      %c0_87 = arith.constant 0 : index
      %c0_88 = arith.constant 0 : index
      %115 = vector.load %arg14[%c0_87, %c0_88] : memref<4x1xf32, #tpu.memory_space<vmem>>, vector<4x1xf32>
      tpu.vector_store %arg14[%c0_87, %c0_88], %114 {strides = array<i32>} : memref<4x1xf32, #tpu.memory_space<vmem>>, vector<4x1xf32>,
      %c0_89 = arith.constant 0 : index
      %c0_90 = arith.constant 0 : index
      %116 = vector.load %arg15[%c0_89, %c0_90] : memref<4x1xf32, #tpu.memory_space<vmem>>, vector<4x1xf32>
      %117 = arith.mulf %110, %110 : vector<4x256xf32>
      %cst_91 = arith.constant dense<0.000000e+00> : vector<4xf32>
      %118 = vector.multi_reduction <add>, %117, %cst_91 [1] : vector<4x256xf32> to vector<4xf32>
      %119 = vector.shape_cast %118 : vector<4xf32> to vector<4x1xf32>
      %120 = arith.addf %116, %119 : vector<4x1xf32>
      %c0_92 = arith.constant 0 : index
      %c0_93 = arith.constant 0 : index
      %121 = vector.load %arg15[%c0_92, %c0_93] : memref<4x1xf32, #tpu.memory_space<vmem>>, vector<4x1xf32>
      tpu.vector_store %arg15[%c0_92, %c0_93], %120 {strides = array<i32>} : memref<4x1xf32, #tpu.memory_space<vmem>>, vector<4x1xf32>,
    } else {
    }
    %c1_i32_72 = arith.constant 1 : i32
    %93 = arith.cmpi sge, %arg0, %c1_i32_72 : i32
    %94 = arith.extui %93 : i1 to i32
    %c0_i32_73 = arith.constant 0 : i32
    %95 = arith.cmpi ne, %94, %c0_i32_73 : i32
    scf.if %95 {
      %c0_74 = arith.constant 0 : index
      %c0_75 = arith.constant 0 : index
      %96 = vector.load %arg14[%c0_74, %c0_75] : memref<4x1xf32, #tpu.memory_space<vmem>>, vector<4x1xf32>
      %cst_76 = arith.constant 3.125000e-02 : f32
      %97 = vector.broadcast %cst_76 : f32 to vector<4x1xf32>
      %98 = arith.mulf %96, %97 : vector<4x1xf32>
      %c0_77 = arith.constant 0 : index
      %c0_78 = arith.constant 0 : index
      %99 = vector.load %arg15[%c0_77, %c0_78] : memref<4x1xf32, #tpu.memory_space<vmem>>, vector<4x1xf32>
      %cst_79 = arith.constant 3.125000e-02 : f32
      %100 = vector.broadcast %cst_79 : f32 to vector<4x1xf32>
      %101 = arith.mulf %99, %100 : vector<4x1xf32>
      %102 = arith.mulf %98, %98 : vector<4x1xf32>
      %103 = arith.subf %101, %102 : vector<4x1xf32>
      %c0_80 = arith.constant 0 : index
      %c0_81 = arith.constant 0 : index
      %104 = vector.load %arg8[%c0_80, %c0_81] : memref<4x1xf32, #tpu.memory_space<vmem>>, vector<4x1xf32>
      %cst_82 = arith.constant 9.99999974E-6 : f32
      %105 = vector.broadcast %cst_82 : f32 to vector<4x1xf32>
      %106 = arith.addf %103, %105 : vector<4x1xf32>
      %107 = math.rsqrt %106 : vector<4x1xf32>
      %108 = arith.mulf %104, %107 : vector<4x1xf32>
      %c0_83 = arith.constant 0 : index
      %c0_84 = arith.constant 0 : index
      %109 = vector.load %arg9[%c0_83, %c0_84] : memref<4x1xf32, #tpu.memory_space<vmem>>, vector<4x1xf32>
      %110 = arith.mulf %98, %108 : vector<4x1xf32>
      %111 = arith.subf %109, %110 : vector<4x1xf32>
      %112 = vector.broadcast %108 : vector<4x1xf32> to vector<4x256xf32>
      %113 = arith.mulf %64, %112 : vector<4x256xf32>
      %114 = vector.broadcast %111 : vector<4x1xf32> to vector<4x256xf32>
      %115 = arith.addf %113, %114 : vector<4x256xf32>
      %cst_85 = arith.constant 0.000000e+00 : f32
      %116 = vector.broadcast %cst_85 : f32 to vector<4x256xf32>
      %117 = arith.maximumf %115, %116 : vector<4x256xf32>
      %118 = vector.broadcast %28 : vector<1x256xf32> to vector<4x256xf32>
      %119 = arith.mulf %117, %118 : vector<4x256xf32>
      %120 = vector.broadcast %108 : vector<4x1xf32> to vector<4x256xf32>
      %121 = arith.mulf %89, %120 : vector<4x256xf32>
      %122 = vector.broadcast %111 : vector<4x1xf32> to vector<4x256xf32>
      %123 = arith.addf %121, %122 : vector<4x256xf32>
      %cst_86 = arith.constant 0.000000e+00 : f32
      %124 = vector.broadcast %cst_86 : f32 to vector<4x256xf32>
      %125 = arith.maximumf %123, %124 : vector<4x256xf32>
      %126 = vector.broadcast %28 : vector<1x256xf32> to vector<4x256xf32>
      %127 = arith.mulf %125, %126 : vector<4x256xf32>
      %c0_87 = arith.constant 0 : index
      %c0_88 = arith.constant 0 : index
      %c0_89 = arith.constant 0 : index
      %128 = vector.load %arg7[%c0_87, %c0_88, %c0_89] : memref<3x6x4xf32, #tpu.memory_space<vmem>>, vector<1x6x4xf32>
      %129 = vector.shape_cast %128 : vector<1x6x4xf32> to vector<6x4xf32>
      %c1_i32_90 = arith.constant 1 : i32
      %130 = tpu.dynamic_rotate %127 by %c1_i32_90 dim 1 : vector<4x256xf32>, i32 -> vector<4x256xf32>
      %cst_91 = arith.constant dense<0.000000e+00> : vector<6x256xf32>
      %131 = tpu.matmul %129, %130, %cst_91 {dimension_numbers = #tpu.dot_dimension_numbers<[1], [0], [0], [1], [0, 0, 1, 1], [], []>} : vector<6x4xf32>, vector<4x256xf32>, vector<6x256xf32> -> vector<6x256xf32>
      %c1_92 = arith.constant 1 : index
      %c0_93 = arith.constant 0 : index
      %c0_94 = arith.constant 0 : index
      %132 = vector.load %arg7[%c1_92, %c0_93, %c0_94] : memref<3x6x4xf32, #tpu.memory_space<vmem>>, vector<1x6x4xf32>
      %133 = vector.shape_cast %132 : vector<1x6x4xf32> to vector<6x4xf32>
      %cst_95 = arith.constant dense<0.000000e+00> : vector<6x256xf32>
      %134 = tpu.matmul %133, %119, %cst_95 {dimension_numbers = #tpu.dot_dimension_numbers<[1], [0], [0], [1], [0, 0, 1, 1], [], []>} : vector<6x4xf32>, vector<4x256xf32>, vector<6x256xf32> -> vector<6x256xf32>
      %135 = arith.addf %131, %134 : vector<6x256xf32>
      %c2_96 = arith.constant 2 : index
      %c0_97 = arith.constant 0 : index
      %c0_98 = arith.constant 0 : index
      %136 = vector.load %arg7[%c2_96, %c0_97, %c0_98] : memref<3x6x4xf32, #tpu.memory_space<vmem>>, vector<1x6x4xf32>
      %137 = vector.shape_cast %136 : vector<1x6x4xf32> to vector<6x4xf32>
      %cst_99 = arith.constant dense<0.000000e+00> : vector<6x256xf32>
      %138 = tpu.matmul %137, %127, %cst_99 {dimension_numbers = #tpu.dot_dimension_numbers<[1], [0], [0], [1], [0, 0, 1, 1], [], []>} : vector<6x4xf32>, vector<4x256xf32>, vector<6x256xf32> -> vector<6x256xf32>
      %139 = arith.addf %135, %138 : vector<6x256xf32>
      %c0_100 = arith.constant 0 : index
      %c0_101 = arith.constant 0 : index
      %c0_102 = arith.constant 0 : index
      %140 = vector.load %arg7[%c0_100, %c0_101, %c0_102] : memref<3x6x4xf32, #tpu.memory_space<vmem>>, vector<1x6x4xf32>
      %141 = vector.shape_cast %140 : vector<1x6x4xf32> to vector<6x4xf32>
      %cst_103 = arith.constant dense<0.000000e+00> : vector<6x256xf32>
      %142 = tpu.matmul %141, %119, %cst_103 {dimension_numbers = #tpu.dot_dimension_numbers<[1], [0], [0], [1], [0, 0, 1, 1], [], []>} : vector<6x4xf32>, vector<4x256xf32>, vector<6x256xf32> -> vector<6x256xf32>
      %c1_104 = arith.constant 1 : index
      %c0_105 = arith.constant 0 : index
      %c0_106 = arith.constant 0 : index
      %143 = vector.load %arg7[%c1_104, %c0_105, %c0_106] : memref<3x6x4xf32, #tpu.memory_space<vmem>>, vector<1x6x4xf32>
      %144 = vector.shape_cast %143 : vector<1x6x4xf32> to vector<6x4xf32>
      %cst_107 = arith.constant dense<0.000000e+00> : vector<6x256xf32>
      %145 = tpu.matmul %144, %127, %cst_107 {dimension_numbers = #tpu.dot_dimension_numbers<[1], [0], [0], [1], [0, 0, 1, 1], [], []>} : vector<6x4xf32>, vector<4x256xf32>, vector<6x256xf32> -> vector<6x256xf32>
      %146 = arith.addf %142, %145 : vector<6x256xf32>
      %c2_108 = arith.constant 2 : index
      %c0_109 = arith.constant 0 : index
      %c0_110 = arith.constant 0 : index
      %147 = vector.load %arg7[%c2_108, %c0_109, %c0_110] : memref<3x6x4xf32, #tpu.memory_space<vmem>>, vector<1x6x4xf32>
      %148 = vector.shape_cast %147 : vector<1x6x4xf32> to vector<6x4xf32>
      %c255_i32_111 = arith.constant 255 : i32
      %149 = tpu.dynamic_rotate %119 by %c255_i32_111 dim 1 : vector<4x256xf32>, i32 -> vector<4x256xf32>
      %cst_112 = arith.constant dense<0.000000e+00> : vector<6x256xf32>
      %150 = tpu.matmul %148, %149, %cst_112 {dimension_numbers = #tpu.dot_dimension_numbers<[1], [0], [0], [1], [0, 0, 1, 1], [], []>} : vector<6x4xf32>, vector<4x256xf32>, vector<6x256xf32> -> vector<6x256xf32>
      %151 = arith.addf %146, %150 : vector<6x256xf32>
      %c1_i32_113 = arith.constant 1 : i32
      %152 = arith.cmpi eq, %arg0, %c1_i32_113 : i32
      %153 = arith.extui %152 : i1 to i32
      %c0_i32_114 = arith.constant 0 : i32
      %154 = arith.cmpi ne, %153, %c0_i32_114 : i32
      scf.if %154 {
        %158 = vector.broadcast %28 : vector<1x256xf32> to vector<6x256xf32>
        %159 = arith.mulf %139, %158 : vector<6x256xf32>
        %c0_116 = arith.constant 0 : index
        %c0_117 = arith.constant 0 : index
        %160 = vector.load %arg16[%c0_116, %c0_117] : memref<6x1xf32, #tpu.memory_space<vmem>>, vector<6x1xf32>
        %cst_118 = arith.constant dense<0.000000e+00> : vector<6xf32>
        %161 = vector.multi_reduction <add>, %159, %cst_118 [1] : vector<6x256xf32> to vector<6xf32>
        %162 = vector.shape_cast %161 : vector<6xf32> to vector<6x1xf32>
        %163 = arith.addf %160, %162 : vector<6x1xf32>
        %c0_119 = arith.constant 0 : index
        %c0_120 = arith.constant 0 : index
        %164 = vector.load %arg16[%c0_119, %c0_120] : memref<6x1xf32, #tpu.memory_space<vmem>>, vector<6x1xf32>
        tpu.vector_store %arg16[%c0_119, %c0_120], %163 {strides = array<i32>} : memref<6x1xf32, #tpu.memory_space<vmem>>, vector<6x1xf32>,
        %c0_121 = arith.constant 0 : index
        %c0_122 = arith.constant 0 : index
        %165 = vector.load %arg17[%c0_121, %c0_122] : memref<6x1xf32, #tpu.memory_space<vmem>>, vector<6x1xf32>
        %166 = arith.mulf %159, %159 : vector<6x256xf32>
        %cst_123 = arith.constant dense<0.000000e+00> : vector<6xf32>
        %167 = vector.multi_reduction <add>, %166, %cst_123 [1] : vector<6x256xf32> to vector<6xf32>
        %168 = vector.shape_cast %167 : vector<6xf32> to vector<6x1xf32>
        %169 = arith.addf %165, %168 : vector<6x1xf32>
        %c0_124 = arith.constant 0 : index
        %c0_125 = arith.constant 0 : index
        %170 = vector.load %arg17[%c0_124, %c0_125] : memref<6x1xf32, #tpu.memory_space<vmem>>, vector<6x1xf32>
        tpu.vector_store %arg17[%c0_124, %c0_125], %169 {strides = array<i32>} : memref<6x1xf32, #tpu.memory_space<vmem>>, vector<6x1xf32>,
        %171 = vector.broadcast %28 : vector<1x256xf32> to vector<6x256xf32>
        %172 = arith.mulf %151, %171 : vector<6x256xf32>
        %c0_126 = arith.constant 0 : index
        %c0_127 = arith.constant 0 : index
        %173 = vector.load %arg16[%c0_126, %c0_127] : memref<6x1xf32, #tpu.memory_space<vmem>>, vector<6x1xf32>
        %cst_128 = arith.constant dense<0.000000e+00> : vector<6xf32>
        %174 = vector.multi_reduction <add>, %172, %cst_128 [1] : vector<6x256xf32> to vector<6xf32>
        %175 = vector.shape_cast %174 : vector<6xf32> to vector<6x1xf32>
        %176 = arith.addf %173, %175 : vector<6x1xf32>
        %c0_129 = arith.constant 0 : index
        %c0_130 = arith.constant 0 : index
        %177 = vector.load %arg16[%c0_129, %c0_130] : memref<6x1xf32, #tpu.memory_space<vmem>>, vector<6x1xf32>
        tpu.vector_store %arg16[%c0_129, %c0_130], %176 {strides = array<i32>} : memref<6x1xf32, #tpu.memory_space<vmem>>, vector<6x1xf32>,
        %c0_131 = arith.constant 0 : index
        %c0_132 = arith.constant 0 : index
        %178 = vector.load %arg17[%c0_131, %c0_132] : memref<6x1xf32, #tpu.memory_space<vmem>>, vector<6x1xf32>
        %179 = arith.mulf %172, %172 : vector<6x256xf32>
        %cst_133 = arith.constant dense<0.000000e+00> : vector<6xf32>
        %180 = vector.multi_reduction <add>, %179, %cst_133 [1] : vector<6x256xf32> to vector<6xf32>
        %181 = vector.shape_cast %180 : vector<6xf32> to vector<6x1xf32>
        %182 = arith.addf %178, %181 : vector<6x1xf32>
        %c0_134 = arith.constant 0 : index
        %c0_135 = arith.constant 0 : index
        %183 = vector.load %arg17[%c0_134, %c0_135] : memref<6x1xf32, #tpu.memory_space<vmem>>, vector<6x1xf32>
        tpu.vector_store %arg17[%c0_134, %c0_135], %182 {strides = array<i32>} : memref<6x1xf32, #tpu.memory_space<vmem>>, vector<6x1xf32>,
      } else {
      }
      %c2_i32 = arith.constant 2 : i32
      %155 = arith.cmpi eq, %arg0, %c2_i32 : i32
      %156 = arith.extui %155 : i1 to i32
      %c0_i32_115 = arith.constant 0 : i32
      %157 = arith.cmpi ne, %156, %c0_i32_115 : i32
      scf.if %157 {
        %c0_116 = arith.constant 0 : index
        %c0_117 = arith.constant 0 : index
        %158 = vector.load %arg16[%c0_116, %c0_117] : memref<6x1xf32, #tpu.memory_space<vmem>>, vector<6x1xf32>
        %cst_118 = arith.constant 3.125000e-02 : f32
        %159 = vector.broadcast %cst_118 : f32 to vector<6x1xf32>
        %160 = arith.mulf %158, %159 : vector<6x1xf32>
        %c0_119 = arith.constant 0 : index
        %c0_120 = arith.constant 0 : index
        %161 = vector.load %arg17[%c0_119, %c0_120] : memref<6x1xf32, #tpu.memory_space<vmem>>, vector<6x1xf32>
        %cst_121 = arith.constant 3.125000e-02 : f32
        %162 = vector.broadcast %cst_121 : f32 to vector<6x1xf32>
        %163 = arith.mulf %161, %162 : vector<6x1xf32>
        %164 = arith.mulf %160, %160 : vector<6x1xf32>
        %165 = arith.subf %163, %164 : vector<6x1xf32>
        %c0_122 = arith.constant 0 : index
        %c0_123 = arith.constant 0 : index
        %166 = vector.load %arg10[%c0_122, %c0_123] : memref<6x1xf32, #tpu.memory_space<vmem>>, vector<6x1xf32>
        %cst_124 = arith.constant 9.99999974E-6 : f32
        %167 = vector.broadcast %cst_124 : f32 to vector<6x1xf32>
        %168 = arith.addf %165, %167 : vector<6x1xf32>
        %169 = math.rsqrt %168 : vector<6x1xf32>
        %170 = arith.mulf %166, %169 : vector<6x1xf32>
        %c0_125 = arith.constant 0 : index
        %c0_126 = arith.constant 0 : index
        %171 = vector.load %arg11[%c0_125, %c0_126] : memref<6x1xf32, #tpu.memory_space<vmem>>, vector<6x1xf32>
        %172 = arith.mulf %160, %170 : vector<6x1xf32>
        %173 = arith.subf %171, %172 : vector<6x1xf32>
        %174 = vector.broadcast %170 : vector<6x1xf32> to vector<6x256xf32>
        %175 = arith.mulf %139, %174 : vector<6x256xf32>
        %176 = vector.broadcast %173 : vector<6x1xf32> to vector<6x256xf32>
        %177 = arith.addf %175, %176 : vector<6x256xf32>
        %cst_127 = arith.constant 0.000000e+00 : f32
        %178 = vector.broadcast %cst_127 : f32 to vector<6x256xf32>
        %179 = arith.maximumf %177, %178 : vector<6x256xf32>
        %c0_128 = arith.constant 0 : index
        %c0_129 = arith.constant 0 : index
        %180 = vector.load %arg12[%c0_128, %c0_129] : memref<6x256xf32, #tpu.memory_space<vmem>>, vector<6x256xf32>
        tpu.vector_store %arg12[%c0_128, %c0_129], %179 {strides = array<i32>} : memref<6x256xf32, #tpu.memory_space<vmem>>, vector<6x256xf32>,
        %181 = vector.broadcast %170 : vector<6x1xf32> to vector<6x256xf32>
        %182 = arith.mulf %151, %181 : vector<6x256xf32>
        %183 = vector.broadcast %173 : vector<6x1xf32> to vector<6x256xf32>
        %184 = arith.addf %182, %183 : vector<6x256xf32>
        %cst_130 = arith.constant 0.000000e+00 : f32
        %185 = vector.broadcast %cst_130 : f32 to vector<6x256xf32>
        %186 = arith.maximumf %184, %185 : vector<6x256xf32>
        %c0_131 = arith.constant 0 : index
        %c0_132 = arith.constant 0 : index
        %187 = vector.load %arg13[%c0_131, %c0_132] : memref<6x256xf32, #tpu.memory_space<vmem>>, vector<6x256xf32>
        tpu.vector_store %arg13[%c0_131, %c0_132], %186 {strides = array<i32>} : memref<6x256xf32, #tpu.memory_space<vmem>>, vector<6x256xf32>,
      } else {
      }
    } else {
    }
    return
  }
  func.func @transform_0(%arg0: i32, %arg1: i32) -> (i32, i32) {
    %c0_i32 = arith.constant 0 : i32
    %c0_i32_0 = arith.constant 0 : i32
    return %c0_i32, %arg1 : i32, i32
  }
  func.func @transform_1(%arg0: i32, %arg1: i32) -> (i32, i32, i32) {
    %c0_i32 = arith.constant 0 : i32
    %c0_i32_0 = arith.constant 0 : i32
    %c0_i32_1 = arith.constant 0 : i32
    return %c0_i32, %c0_i32_0, %arg1 : i32, i32, i32
  }
  func.func @transform_2(%arg0: i32, %arg1: i32) -> (i32, i32, i32) {
    %c0_i32 = arith.constant 0 : i32
    %c0_i32_0 = arith.constant 0 : i32
    %c0_i32_1 = arith.constant 0 : i32
    %c0_i32_2 = arith.constant 0 : i32
    return %c0_i32, %c0_i32_0, %c0_i32_1 : i32, i32, i32
  }
  func.func @transform_3(%arg0: i32, %arg1: i32) -> (i32, i32, i32) {
    %c0_i32 = arith.constant 0 : i32
    %c0_i32_0 = arith.constant 0 : i32
    %c0_i32_1 = arith.constant 0 : i32
    %c0_i32_2 = arith.constant 0 : i32
    return %c0_i32, %c0_i32_0, %c0_i32_1 : i32, i32, i32
  }
  func.func @transform_4(%arg0: i32, %arg1: i32) -> (i32, i32, i32) {
    %c0_i32 = arith.constant 0 : i32
    %c0_i32_0 = arith.constant 0 : i32
    %c0_i32_1 = arith.constant 0 : i32
    %c0_i32_2 = arith.constant 0 : i32
    return %c0_i32, %c0_i32_0, %c0_i32_1 : i32, i32, i32
  }
  func.func @transform_5(%arg0: i32, %arg1: i32) -> (i32, i32, i32) {
    %c0_i32 = arith.constant 0 : i32
    %c0_i32_0 = arith.constant 0 : i32
    %c0_i32_1 = arith.constant 0 : i32
    %c0_i32_2 = arith.constant 0 : i32
    return %c0_i32, %c0_i32_0, %c0_i32_1 : i32, i32, i32
  }
  func.func @transform_6(%arg0: i32, %arg1: i32) -> (i32, i32) {
    %c0_i32 = arith.constant 0 : i32
    %c0_i32_0 = arith.constant 0 : i32
    %c0_i32_1 = arith.constant 0 : i32
    return %c0_i32, %c0_i32_0 : i32, i32
  }
  func.func @transform_7(%arg0: i32, %arg1: i32) -> (i32, i32) {
    %c0_i32 = arith.constant 0 : i32
    %c0_i32_0 = arith.constant 0 : i32
    %c0_i32_1 = arith.constant 0 : i32
    return %c0_i32, %c0_i32_0 : i32, i32
  }
  func.func @transform_8(%arg0: i32, %arg1: i32) -> (i32, i32) {
    %c0_i32 = arith.constant 0 : i32
    %c0_i32_0 = arith.constant 0 : i32
    %c0_i32_1 = arith.constant 0 : i32
    return %c0_i32, %c0_i32_0 : i32, i32
  }
  func.func @transform_9(%arg0: i32, %arg1: i32) -> (i32, i32) {
    %c0_i32 = arith.constant 0 : i32
    %c0_i32_0 = arith.constant 0 : i32
    %c0_i32_1 = arith.constant 0 : i32
    return %c0_i32, %c0_i32_0 : i32, i32
  }
  func.func @transform_10(%arg0: i32, %arg1: i32) -> (i32, i32) {
    %c0_i32 = arith.constant 0 : i32
    %c0_i32_0 = arith.constant 0 : i32
    return %c0_i32, %arg1 : i32, i32
  }
  func.func @transform_11(%arg0: i32, %arg1: i32) -> (i32, i32) {
    %c0_i32 = arith.constant 0 : i32
    %c0_i32_0 = arith.constant 0 : i32
    return %c0_i32, %arg1 : i32, i32
  }
}

</mosaic_0001>

<llo_original>
// kernel: tpu_custom_call.1
$region0: #{tpu_custom_call.1}
  #allocation0 [shape = 'u32[]', space=smem, size = 0x4, offset = 0x4, fixed_abs, tag = 'smem constant byte address 0x4 - core index']
  #allocation1 [shape = 'u32[144,128]{1,0:T(1,128)}', space=vmem, size = 0x12000, scoped, tag = 'internal scratch']
  #allocation2 [shape = 'f32[4,1]{1,0:T(4,128)}', space=vmem, size = 0x800, scoped, tag = 'scratch operand']
  #allocation3 [shape = 'f32[4,1]{1,0:T(4,128)}', space=vmem, size = 0x800, scoped, tag = 'scratch operand']
  #allocation4 [shape = 'f32[6,1]{1,0:T(8,128)}', space=vmem, size = 0x1000, scoped, tag = 'scratch operand']
  #allocation5 [shape = 'f32[6,1]{1,0:T(8,128)}', space=vmem, size = 0x1000, scoped, tag = 'scratch operand']
  %s0 = inlined_call_operand.vmem [shape: f32[5,256], index: 0, kind: input, shape index: {}]
  %s1 = inlined_call_operand.vmem [shape: f32[2,4,256], index: 1, kind: input, shape index: {}]
  %s2 = inlined_call_operand.hbm [shape: f32[2,4,5], index: 2, kind: input, shape index: {}]
  %s3 = inlined_call_operand.vmem [shape: f32[3,4,4], index: 3, kind: input, shape index: {}]
  %s4 = inlined_call_operand.vmem [shape: f32[3,4,4], index: 4, kind: input, shape index: {}]
  %s5 = inlined_call_operand.vmem [shape: f32[3,6,4], index: 5, kind: input, shape index: {}]
  %s6 = inlined_call_operand.vmem [shape: f32[4,1], index: 6, kind: input, shape index: {}]
  %s7 = inlined_call_operand.vmem [shape: f32[4,1], index: 7, kind: input, shape index: {}]
  %s8 = inlined_call_operand.vmem [shape: f32[6,1], index: 8, kind: input, shape index: {}]
  %s9 = inlined_call_operand.vmem [shape: f32[6,1], index: 9, kind: input, shape index: {}]
  %s10 = inlined_call_operand.hbm [shape: f32[6,256], index: 10, kind: output, shape index: {0}]
  %s11 = inlined_call_operand.hbm [shape: f32[6,256], index: 11, kind: output, shape index: {1}]
  %12 = xla_tuple %s10, %s11
  %s13 = sld [smem:[#allocation0]]
  $region105: #{tpu_custom_call.1} parent=0
    _
  %s15 = ssub.s32 1, %s13
  %s16 = scalar_select 0, %s15, %s13
  $region1: #{tpu_custom_call.1} parent=0
    #allocation6 [shape = 'u8[4096]{0}', space=vmem, size = 0x1000, scoped, tag = 'input window, operand 2, single buffered']
    #allocation7 [shape = 's32[2]{0}', space=sflag, size = 0x8, scoped, tag = 'scoped memory for tpu_custom_call.1']
    #allocation8 [shape = 's32[2]{0}', space=sflag, size = 0x8, scoped, tag = 'scoped memory for tpu_custom_call.1']
    #allocation9 [shape = 'u8[8192]{0}', space=vmem, size = 0x2000, scoped, tag = 'output window, operand 0, single buffered']
    #allocation10 [shape = 'u8[8192]{0}', space=vmem, size = 0x2000, scoped, tag = 'output window, operand 1, single buffered']
    #allocation11 [shape = 's32[1]{0}', space=sflag, size = 0x4, scoped, tag = 'scoped memory for tpu_custom_call.1']
    %17 = vsyncpa [#allocation7], 0
    %18 = vsyncpa [#allocation8], 0
    %19 = vsyncpa [#allocation11], 0
    loop: start=0, step=1, limit=5
    $region2: #{tpu_custom_call.1} parent=1 // loop_pre_header
      _
    $region3: #{tpu_custom_call.1} parent=1 // loop_header
      %s21 = sphi 0, %s25
      %p22 = scmp.ge.s32.totalorder %s21, 5
      %s28 = sphi 0, %s40
      %s29 = sphi 0, %s36
      %s30 = sphi 0, %s28
      %s31 = sphi 0, %s29
      %s32 = sphi 0, %s30
      %s33 = sphi 0, %s31
      %s43 = sphi 0, %s45
      %s46 = sphi 0, %s43
      %s47 = sphi 0, %s46
      %s63 = sphi 0, %s47
      %s69 = sphi 0, %s71
      %s72 = sphi 0, %s69
      %s73 = sphi 0, %s72
      %s89 = sphi 0, %s73
      %s93 = sphi 0, %s93
      %s95 = sphi 0, %s93
      %s96 = sphi 0, %s95
      %s110 = sphi 0, %s96
      %s114 = sphi 0, %s114
      %s116 = sphi 0, %s114
      %s117 = sphi 0, %s116
      %s131 = sphi 0, %s117
      %s135 = sphi 0, %s135
      %s137 = sphi 0, %s135
      %s138 = sphi 0, %s137
      %s152 = sphi 0, %s138
      %s156 = sphi 0, %s156
      %s158 = sphi 0, %s156
      %s159 = sphi 0, %s158
      %s173 = sphi 0, %s159
      %s177 = sphi 0, %s177
      %s179 = sphi 0, %s177
      %s180 = sphi 0, %s179
      %s194 = sphi 0, %s180
      %s198 = sphi 0, %s198
      %s200 = sphi 0, %s198
      %s201 = sphi 0, %s200
      %s215 = sphi 0, %s201
      %s219 = sphi 0, %s219
      %s221 = sphi 0, %s219
      %s222 = sphi 0, %s221
      %s236 = sphi 0, %s222
      %s240 = sphi 0, %s240
      %s242 = sphi 0, %s240
      %s243 = sphi 0, %s242
      %s257 = sphi 0, %s243
      %s263 = sphi 0, %s265
      %s266 = sphi 0, %s263
      %s267 = sphi 0, %s266
      %s283 = sphi 0, %s267
      %s289 = sphi 0, %s291
      %s292 = sphi 0, %s289
      %s293 = sphi 0, %s292
      %s309 = sphi 0, %s293
    $region4: #{tpu_custom_call.1} parent=1 // loop_header_branch
      %24 = sbr.rel (%p22) target = $region8
    $region5: #{tpu_custom_call.1} parent=1 // loop_body
      %s26 = ssub.s32 %s21, 1
      %s27 = ssub.s32 %s21, 2
      %s34 = sadd.s32 1, %s29
      %p35 = scmp.ge.s32.totalorder %s34, 1
      %s36 = scalar_select %p35, 0, %s34
      %s37 = sadd.s32 1, %s28
      %s38 = scalar_select %p35, %s37, %s28
      %p39 = scmp.ge.s32.totalorder %s38, 3
      %s40 = scalar_select %p39, 0, %s38
      %s41 = ssub.s32 %s29, %s36
      %p42 = scmp.eq.s32.totalorder %s41, 0
      %s44 = sadd.s32 %s43, 1
      %s45 = scalar_select %p42, %s43, %s44
      %p48 = pneg %p42
      %p49 = scmp.eq.s32.totalorder %s21, 2
      %p50 = por %p48, %p49
      %p51 = scmp.ne.s32.totalorder %s43, %s46
      %p52 = scmp.eq.s32.totalorder %s21, 0
      %p53 = por %p51, %p52
      %p54 = scmp.ne.s32.totalorder %s43, %s46
      %p55 = scmp.eq.s32.totalorder %s26, 2
      %p56 = por %p54, %p55
      %p57 = scmp.ne.s32.totalorder %s46, %s47
      %p58 = scmp.eq.s32.totalorder %s26, 0
      %p59 = por %p57, %p58
      %p60 = scmp.ne.s32.totalorder %s46, %s47
      %p61 = scmp.eq.s32.totalorder %s27, 2
      %p62 = por %p60, %p61
      %p64 = scmp.ne.s32.totalorder %s47, %s63
      %p65 = scmp.eq.s32.totalorder %s27, 0
      %p66 = por %p64, %p65
      %s67 = ssub.s32 %s29, %s36
      %p68 = scmp.eq.s32.totalorder %s67, 0
      %s70 = sadd.s32 %s69, 1
      %s71 = scalar_select %p68, %s69, %s70
      %p74 = pneg %p68
      %p75 = scmp.eq.s32.totalorder %s21, 2
      %p76 = por %p74, %p75
      %p77 = scmp.ne.s32.totalorder %s69, %s72
      %p78 = scmp.eq.s32.totalorder %s21, 0
      %p79 = por %p77, %p78
      %p80 = scmp.ne.s32.totalorder %s69, %s72
      %p81 = scmp.eq.s32.totalorder %s26, 2
      %p82 = por %p80, %p81
      %p83 = scmp.ne.s32.totalorder %s72, %s73
      %p84 = scmp.eq.s32.totalorder %s26, 0
      %p85 = por %p83, %p84
      %p86 = scmp.ne.s32.totalorder %s72, %s73
      %p87 = scmp.eq.s32.totalorder %s27, 2
      %p88 = por %p86, %p87
      %p90 = scmp.ne.s32.totalorder %s73, %s89
      %p91 = scmp.eq.s32.totalorder %s27, 0
      %p92 = por %p90, %p91
      %s94 = sadd.s32 %s93, 1
      %p97 = scmp.eq.s32.totalorder %s21, 2
      %p98 = scmp.ne.s32.totalorder %s93, %s95
      %p99 = scmp.eq.s32.totalorder %s21, 0
      %p100 = por %p98, %p99
      %p101 = scmp.ne.s32.totalorder %s93, %s95
      %p102 = scmp.eq.s32.totalorder %s26, 2
      %p103 = por %p101, %p102
      %p104 = scmp.ne.s32.totalorder %s95, %s96
      %p105 = scmp.eq.s32.totalorder %s26, 0
      %p106 = por %p104, %p105
      %p107 = scmp.ne.s32.totalorder %s95, %s96
      %p108 = scmp.eq.s32.totalorder %s27, 2
      %p109 = por %p107, %p108
      %p111 = scmp.ne.s32.totalorder %s96, %s110
      %p112 = scmp.eq.s32.totalorder %s27, 0
      %p113 = por %p111, %p112
      %s115 = sadd.s32 %s114, 1
      %p118 = scmp.eq.s32.totalorder %s21, 2
      %p119 = scmp.ne.s32.totalorder %s114, %s116
      %p120 = scmp.eq.s32.totalorder %s21, 0
      %p121 = por %p119, %p120
      %p122 = scmp.ne.s32.totalorder %s114, %s116
      %p123 = scmp.eq.s32.totalorder %s26, 2
      %p124 = por %p122, %p123
      %p125 = scmp.ne.s32.totalorder %s116, %s117
      %p126 = scmp.eq.s32.totalorder %s26, 0
      %p127 = por %p125, %p126
      %p128 = scmp.ne.s32.totalorder %s116, %s117
      %p129 = scmp.eq.s32.totalorder %s27, 2
      %p130 = por %p128, %p129
      %p132 = scmp.ne.s32.totalorder %s117, %s131
      %p133 = scmp.eq.s32.totalorder %s27, 0
      %p134 = por %p132, %p133
      %s136 = sadd.s32 %s135, 1
      %p139 = scmp.eq.s32.totalorder %s21, 2
      %p140 = scmp.ne.s32.totalorder %s135, %s137
      %p141 = scmp.eq.s32.totalorder %s21, 0
      %p142 = por %p140, %p141
      %p143 = scmp.ne.s32.totalorder %s135, %s137
      %p144 = scmp.eq.s32.totalorder %s26, 2
      %p145 = por %p143, %p144
      %p146 = scmp.ne.s32.totalorder %s137, %s138
      %p147 = scmp.eq.s32.totalorder %s26, 0
      %p148 = por %p146, %p147
      %p149 = scmp.ne.s32.totalorder %s137, %s138
      %p150 = scmp.eq.s32.totalorder %s27, 2
      %p151 = por %p149, %p150
      %p153 = scmp.ne.s32.totalorder %s138, %s152
      %p154 = scmp.eq.s32.totalorder %s27, 0
      %p155 = por %p153, %p154
      %s157 = sadd.s32 %s156, 1
      %p160 = scmp.eq.s32.totalorder %s21, 2
      %p161 = scmp.ne.s32.totalorder %s156, %s158
      %p162 = scmp.eq.s32.totalorder %s21, 0
      %p163 = por %p161, %p162
      %p164 = scmp.ne.s32.totalorder %s156, %s158
      %p165 = scmp.eq.s32.totalorder %s26, 2
      %p166 = por %p164, %p165
      %p167 = scmp.ne.s32.totalorder %s158, %s159
      %p168 = scmp.eq.s32.totalorder %s26, 0
      %p169 = por %p167, %p168
      %p170 = scmp.ne.s32.totalorder %s158, %s159
      %p171 = scmp.eq.s32.totalorder %s27, 2
      %p172 = por %p170, %p171
      %p174 = scmp.ne.s32.totalorder %s159, %s173
      %p175 = scmp.eq.s32.totalorder %s27, 0
      %p176 = por %p174, %p175
      %s178 = sadd.s32 %s177, 1
      %p181 = scmp.eq.s32.totalorder %s21, 2
      %p182 = scmp.ne.s32.totalorder %s177, %s179
      %p183 = scmp.eq.s32.totalorder %s21, 0
      %p184 = por %p182, %p183
      %p185 = scmp.ne.s32.totalorder %s177, %s179
      %p186 = scmp.eq.s32.totalorder %s26, 2
      %p187 = por %p185, %p186
      %p188 = scmp.ne.s32.totalorder %s179, %s180
      %p189 = scmp.eq.s32.totalorder %s26, 0
      %p190 = por %p188, %p189
      %p191 = scmp.ne.s32.totalorder %s179, %s180
      %p192 = scmp.eq.s32.totalorder %s27, 2
      %p193 = por %p191, %p192
      %p195 = scmp.ne.s32.totalorder %s180, %s194
      %p196 = scmp.eq.s32.totalorder %s27, 0
      %p197 = por %p195, %p196
      %s199 = sadd.s32 %s198, 1
      %p202 = scmp.eq.s32.totalorder %s21, 2
      %p203 = scmp.ne.s32.totalorder %s198, %s200
      %p204 = scmp.eq.s32.totalorder %s21, 0
      %p205 = por %p203, %p204
      %p206 = scmp.ne.s32.totalorder %s198, %s200
      %p207 = scmp.eq.s32.totalorder %s26, 2
      %p208 = por %p206, %p207
      %p209 = scmp.ne.s32.totalorder %s200, %s201
      %p210 = scmp.eq.s32.totalorder %s26, 0
      %p211 = por %p209, %p210
      %p212 = scmp.ne.s32.totalorder %s200, %s201
      %p213 = scmp.eq.s32.totalorder %s27, 2
      %p214 = por %p212, %p213
      %p216 = scmp.ne.s32.totalorder %s201, %s215
      %p217 = scmp.eq.s32.totalorder %s27, 0
      %p218 = por %p216, %p217
      %s220 = sadd.s32 %s219, 1
      %p223 = scmp.eq.s32.totalorder %s21, 2
      %p224 = scmp.ne.s32.totalorder %s219, %s221
      %p225 = scmp.eq.s32.totalorder %s21, 0
      %p226 = por %p224, %p225
      %p227 = scmp.ne.s32.totalorder %s219, %s221
      %p228 = scmp.eq.s32.totalorder %s26, 2
      %p229 = por %p227, %p228
      %p230 = scmp.ne.s32.totalorder %s221, %s222
      %p231 = scmp.eq.s32.totalorder %s26, 0
      %p232 = por %p230, %p231
      %p233 = scmp.ne.s32.totalorder %s221, %s222
      %p234 = scmp.eq.s32.totalorder %s27, 2
      %p235 = por %p233, %p234
      %p237 = scmp.ne.s32.totalorder %s222, %s236
      %p238 = scmp.eq.s32.totalorder %s27, 0
      %p239 = por %p237, %p238
      %s241 = sadd.s32 %s240, 1
      %p244 = scmp.eq.s32.totalorder %s21, 2
      %p245 = scmp.ne.s32.totalorder %s240, %s242
      %p246 = scmp.eq.s32.totalorder %s21, 0
      %p247 = por %p245, %p246
      %p248 = scmp.ne.s32.totalorder %s240, %s242
      %p249 = scmp.eq.s32.totalorder %s26, 2
      %p250 = por %p248, %p249
      %p251 = scmp.ne.s32.totalorder %s242, %s243
      %p252 = scmp.eq.s32.totalorder %s26, 0
      %p253 = por %p251, %p252
      %p254 = scmp.ne.s32.totalorder %s242, %s243
      %p255 = scmp.eq.s32.totalorder %s27, 2
      %p256 = por %p254, %p255
      %p258 = scmp.ne.s32.totalorder %s243, %s257
      %p259 = scmp.eq.s32.totalorder %s27, 0
      %p260 = por %p258, %p259
      %s261 = ssub.s32 %s29, %s36
      %p262 = scmp.eq.s32.totalorder %s261, 0
      %s264 = sadd.s32 %s263, 1
      %s265 = scalar_select %p262, %s263, %s264
      %p268 = pneg %p262
      %p269 = scmp.eq.s32.totalorder %s21, 2
      %p270 = por %p268, %p269
      %p271 = scmp.ne.s32.totalorder %s263, %s266
      %p272 = scmp.eq.s32.totalorder %s21, 0
      %p273 = por %p271, %p272
      %p274 = scmp.ne.s32.totalorder %s263, %s266
      %p275 = scmp.eq.s32.totalorder %s26, 2
      %p276 = por %p274, %p275
      %p277 = scmp.ne.s32.totalorder %s266, %s267
      %p278 = scmp.eq.s32.totalorder %s26, 0
      %p279 = por %p277, %p278
      %p280 = scmp.ne.s32.totalorder %s266, %s267
      %p281 = scmp.eq.s32.totalorder %s27, 2
      %p282 = por %p280, %p281
      %p284 = scmp.ne.s32.totalorder %s267, %s283
      %p285 = scmp.eq.s32.totalorder %s27, 0
      %p286 = por %p284, %p285
      %s287 = ssub.s32 %s29, %s36
      %p288 = scmp.eq.s32.totalorder %s287, 0
      %s290 = sadd.s32 %s289, 1
      %s291 = scalar_select %p288, %s289, %s290
      %p294 = pneg %p288
      %p295 = scmp.eq.s32.totalorder %s21, 2
      %p296 = por %p294, %p295
      %p297 = scmp.ne.s32.totalorder %s289, %s292
      %p298 = scmp.eq.s32.totalorder %s21, 0
      %p299 = por %p297, %p298
      %p300 = scmp.ne.s32.totalorder %s289, %s292
      %p301 = scmp.eq.s32.totalorder %s26, 2
      %p302 = por %p300, %p301
      %p303 = scmp.ne.s32.totalorder %s292, %s293
      %p304 = scmp.eq.s32.totalorder %s26, 0
      %p305 = por %p303, %p304
      %p306 = scmp.ne.s32.totalorder %s292, %s293
      %p307 = scmp.eq.s32.totalorder %s27, 2
      %p308 = por %p306, %p307
      %p310 = scmp.ne.s32.totalorder %s293, %s309
      %p311 = scmp.eq.s32.totalorder %s27, 0
      %p312 = por %p310, %p311
      %p313 = scmp.le.s32.totalorder 1, %s21
      %p314 = scmp.lt.s32.totalorder %s21, 4
      %p315 = pnand %p313, %p314
      %p316 = pneg %p315
      // Predicated region
      $region9: #{tpu_custom_call.1} parent=5 // pred_check
        _
      $region10: #{tpu_custom_call.1} parent=5 // pred_check_branch
        %318 = sbr.rel (%p315) target = $region12
      $region11: #{tpu_custom_call.1} parent=5 // pred_region
        %s319 = ssub.s32 %s21, 1
        // Predicated region
        $region13: #{tpu_custom_call.1} parent=11 // pred_check
          %p320 = pneg %p59
        $region14: #{tpu_custom_call.1} parent=11 // pred_check_branch
          %322 = sbr.rel (%p320) target = $region16
        $region15: #{tpu_custom_call.1} parent=11 // pred_region
          %s323 = smul.u32 2, %s31
          %p324 = scmp.lt.s32.totalorder %s323, 1
          %s325 = scalar_select %p324, %s323, 1
          %s326 = smul.addr %s325, 8
          %s327 = scalar_lea.vmem %s0, %s326
          %s328 = smul.u32 2, %s31
        $region16: #{tpu_custom_call.1} parent=11 // pred_fallthru
          _
        // Predicated region
        $region17: #{tpu_custom_call.1} parent=11 // pred_check
          %p329 = pneg %p85
        $region18: #{tpu_custom_call.1} parent=11 // pred_check_branch
          %331 = sbr.rel (%p329) target = $region20
        $region19: #{tpu_custom_call.1} parent=11 // pred_region
          %s332 = smul.u32 2, %s31
          %p333 = scmp.lt.s32.totalorder %s332, 1
          %s334 = scalar_select %p333, %s332, 1
          %s335 = smul.addr %s334, 4
          %s336 = scalar_lea.vmem %s1, %s335
          %s337 = smul.u32 2, %s31
        $region20: #{tpu_custom_call.1} parent=11 // pred_fallthru
          _
        // Predicated region
        $region21: #{tpu_custom_call.1} parent=11 // pred_check
          %p338 = pneg %p106
        $region22: #{tpu_custom_call.1} parent=11 // pred_check_branch
          %340 = sbr.rel (%p338) target = $region24
        $region23: #{tpu_custom_call.1} parent=11 // pred_region
          %s342 = ssub.s32 128, 128
          %343 = vsyncadd [#allocation7], %s342
          %s344 = sshll.u32 [#allocation6], 4
          %s345 = int_to_ptr.vmem [resolvable:$true] %s344
          %350 = dma.hbm_to_vmem [thread:$0]  %s2, 128, %s345, [#allocation7], 64, 64, 4
        $region24: #{tpu_custom_call.1} parent=11 // pred_fallthru
          _
        // Predicated region
        $region25: #{tpu_custom_call.1} parent=11 // pred_check
          %p351 = pneg %p127
        $region26: #{tpu_custom_call.1} parent=11 // pred_check_branch
          %353 = sbr.rel (%p351) target = $region28
        $region27: #{tpu_custom_call.1} parent=11 // pred_region
          _
        $region28: #{tpu_custom_call.1} parent=11 // pred_fallthru
          _
        // Predicated region
        $region29: #{tpu_custom_call.1} parent=11 // pred_check
          %p354 = pneg %p148
        $region30: #{tpu_custom_call.1} parent=11 // pred_check_branch
          %356 = sbr.rel (%p354) target = $region32
        $region31: #{tpu_custom_call.1} parent=11 // pred_region
          _
        $region32: #{tpu_custom_call.1} parent=11 // pred_fallthru
          _
        // Predicated region
        $region33: #{tpu_custom_call.1} parent=11 // pred_check
          %p357 = pneg %p169
        $region34: #{tpu_custom_call.1} parent=11 // pred_check_branch
          %359 = sbr.rel (%p357) target = $region36
        $region35: #{tpu_custom_call.1} parent=11 // pred_region
          _
        $region36: #{tpu_custom_call.1} parent=11 // pred_fallthru
          _
        // Predicated region
        $region37: #{tpu_custom_call.1} parent=11 // pred_check
          %p360 = pneg %p190
        $region38: #{tpu_custom_call.1} parent=11 // pred_check_branch
          %362 = sbr.rel (%p360) target = $region40
        $region39: #{tpu_custom_call.1} parent=11 // pred_region
          _
        $region40: #{tpu_custom_call.1} parent=11 // pred_fallthru
          _
        // Predicated region
        $region41: #{tpu_custom_call.1} parent=11 // pred_check
          %p363 = pneg %p211
        $region42: #{tpu_custom_call.1} parent=11 // pred_check_branch
          %365 = sbr.rel (%p363) target = $region44
        $region43: #{tpu_custom_call.1} parent=11 // pred_region
          _
        $region44: #{tpu_custom_call.1} parent=11 // pred_fallthru
          _
        // Predicated region
        $region45: #{tpu_custom_call.1} parent=11 // pred_check
          %p366 = pneg %p232
        $region46: #{tpu_custom_call.1} parent=11 // pred_check_branch
          %368 = sbr.rel (%p366) target = $region48
        $region47: #{tpu_custom_call.1} parent=11 // pred_region
          _
        $region48: #{tpu_custom_call.1} parent=11 // pred_fallthru
          _
        // Predicated region
        $region49: #{tpu_custom_call.1} parent=11 // pred_check
          %p369 = pneg %p253
        $region50: #{tpu_custom_call.1} parent=11 // pred_check_branch
          %371 = sbr.rel (%p369) target = $region52
        $region51: #{tpu_custom_call.1} parent=11 // pred_region
          _
        $region52: #{tpu_custom_call.1} parent=11 // pred_fallthru
          _
      $region12: #{tpu_custom_call.1} parent=5 // pred_fallthru
        _
      %p372 = scmp.lt.s32.totalorder %s21, 3
      // Predicated region
      $region53: #{tpu_custom_call.1} parent=5 // pred_check
        %p373 = pneg %p372
      $region54: #{tpu_custom_call.1} parent=5 // pred_check_branch
        %375 = sbr.rel (%p373) target = $region56
      $region55: #{tpu_custom_call.1} parent=5 // pred_region
        _
      $region56: #{tpu_custom_call.1} parent=5 // pred_fallthru
        _
      %p376 = scmp.le.s32.totalorder 1, %s21
      %p377 = scmp.lt.s32.totalorder %s21, 4
      %p378 = pnand %p376, %p377
      %p379 = pneg %p378
      // Predicated region
      $region57: #{tpu_custom_call.1} parent=5 // pred_check
        _
      $region58: #{tpu_custom_call.1} parent=5 // pred_check_branch
        %381 = sbr.rel (%p378) target = $region60
      $region59: #{tpu_custom_call.1} parent=5 // pred_region
        %s382 = ssub.s32 %s21, 1
        // Predicated region
        $region61: #{tpu_custom_call.1} parent=59 // pred_check
          %p383 = pneg %p106
        $region62: #{tpu_custom_call.1} parent=59 // pred_check_branch
          %385 = sbr.rel (%p383) target = $region64
        $region63: #{tpu_custom_call.1} parent=59 // pred_region
          %386 = dma.done [#allocation7], 128
        $region64: #{tpu_custom_call.1} parent=59 // pred_fallthru
          _
        %s387 = smul.u32 2, %s31
        %p388 = scmp.lt.s32.totalorder %s387, 1
        %s389 = scalar_select %p388, %s387, 1
        %s390 = smul.addr %s389, 8
        %s391 = scalar_lea.vmem %s0, %s390
        %p392 = pneg %p59
        %p393 = pneg %p56
        %s394 = smul.u32 2, %s31
        %p395 = scmp.lt.s32.totalorder %s394, 1
        %s396 = scalar_select %p395, %s394, 1
        %s397 = smul.addr %s396, 4
        %s398 = scalar_lea.vmem %s1, %s397
        %p399 = pneg %p85
        %p400 = pneg %p82
        %p401 = pneg %p106
        %p402 = pneg %p103
        %p403 = pneg %p127
        %p404 = pneg %p124
        %p405 = pneg %p148
        %p406 = pneg %p145
        %p407 = pneg %p169
        %p408 = pneg %p166
        %p409 = pneg %p190
        %p410 = pneg %p187
        %p411 = pneg %p211
        %p412 = pneg %p208
        %p413 = pneg %p232
        %p414 = pneg %p229
        %p415 = pneg %p253
        %p416 = pneg %p250
        %p417 = pneg %p279
        %p418 = pneg %p276
        %p419 = pneg %p305
        %p420 = pneg %p302
        %s421 = smul.u32 2, %s31
        %p422 = scmp.lt.s32.totalorder %s421, 1
        %s423 = scalar_select %p422, %s421, 1
        %s424 = smul.addr %s423, 8
        %s425 = scalar_lea.vmem %s0, %s424
        %s426 = smul.u32 2, %s31
        %s427 = smul.u32 2, %s31
        %p428 = scmp.lt.s32.totalorder %s427, 1
        %s429 = scalar_select %p428, %s427, 1
        %s430 = smul.addr %s429, 4
        %s431 = scalar_lea.vmem %s1, %s430
        %s432 = smul.u32 2, %s31
        %s433 = smul.u32 2, %s31
        %s434 = smul.u32 2, %s31
        %p435 = scmp.eq.s32.totalorder %s30, 0
        %p436 = scmp.eq.s32.totalorder %s31, 0
        %p437 = pnand %p435, %p436
        %p438 = pneg %p437
        // Predicated region
        $region65: #{tpu_custom_call.1} parent=59 // pred_check
          _
        $region66: #{tpu_custom_call.1} parent=59 // pred_check_branch
          %440 = sbr.rel (%p437) target = $region68
        $region67: #{tpu_custom_call.1} parent=59 // pred_region
          %vm441 = vcmask 3072
          %442 = vst.msk [vmem:[#allocation2] sm:$0xf] %vm441, 0.0
          %443 = vst.msk [vmem:[#allocation3] sm:$0xf] %vm441, 0.0
          %vm444 = vcmask 5120
          %445 = vst.msk [vmem:[#allocation4] sm:$0x3f] %vm444, 0.0
          %446 = vst.msk [vmem:[#allocation5] sm:$0x3f] %vm444, 0.0
        $region68: #{tpu_custom_call.1} parent=59 // pred_fallthru
          _
        %v447 = vlaneseq
        %v448 = vand.u32 %v447, 127
        %v449 = vadd.s32 %v448, 128
        %vm450 = vcmp.lt.s32.totalorder %v448, 0
        %v451 = vsub.s32 0, %v448
        %v452 = vsel %vm450, %v451, %v448
        %v453 = vshrl.u32 %v452, 7
        %v454 = vand.u32 %v452, 127
        %v455 = vsub.s32 0, %v454
        %v456 = vsel %vm450, %v455, %v454
        %vm457 = vcmp.lt.s32.totalorder %v449, 0
        %v458 = vsub.s32 0, %v449
        %v459 = vsel %vm457, %v458, %v449
        %v460 = vshrl.u32 %v459, 7
        %v461 = vand.u32 %v459, 127
        %v462 = vsub.s32 0, %v461
        %v463 = vsel %vm457, %v462, %v461
        %vm464 = vcmp.ne.s32.totalorder %v456, 0
        %vm465 = vcmp.ne.s32.totalorder %v463, 0
        %vm466 = vcmp.lt.s32.totalorder %v456, 0
        %vm467 = vcmp.lt.s32.totalorder %v463, 0
        %vm468 = vmand %vm466, %vm464
        %vm469 = vmand %vm467, %vm465
        %v470 = vadd.s32 %v456, 128
        %v471 = vadd.s32 %v463, 128
        %v472 = vsel %vm468, %v470, %v456
        %v473 = vsel %vm469, %v471, %v463
        %vm474 = vcmp.ge.s32.totalorder %v472, 1
        %vm475 = vcmp.ge.s32.totalorder %v473, 1
        %vm476 = vcmp.lt.s32.totalorder %v472, 9
        %vm477 = vcmp.lt.s32.totalorder %v473, 9
        %vm478 = vmand %vm474, %vm476
        %vm479 = vmand %vm475, %vm477
        %v480 = vsel %vm478, 1, 0
        %v481 = vsel %vm479, 1, 0
        %v482 = vcvt.s32.f32 %v480
        %v483 = vcvt.s32.f32 %v481
        %v484 = vld [vmem:[%s425] sm:$0x1f]
        %v485 = vld [vmem:[%s425 + $0x8] sm:$0x1f]
        %v486 = vld [vmem:[#allocation6] sm:$0xf]
        %vm487 = vcmask 39936
        %v489 = vsel %vm487, %v486, 0
        %vm491 = vcmask 1044480
        %v493 = vsel %vm491, %v484, 0
        %v496 = vsel %vm491, %v485, 0
        %498 = vmatprep.subr.mxu0 %v496
        %499 = vmatpush1.msra.mxu0 %v493
        %500 = vmatprep.subr.mxu0 0.0
        %501 = vmatpush1.msra.mxu0 0.0
        %502 = vmatprep.subr.mxu0 0.0
        %503 = vmatpush1.msra.mxu0 0.0
        %504 = vmatprep.subr.mxu0 0.0
        %505 = vmatpush1.msra.mxu0 0.0
        %506 = vmatprep.subr.mxu0 0.0
        %507 = vmatpush1.msra.mxu0 0.0
        %508 = vmatprep.subr.mxu0 0.0
        %509 = vmatpush1.msra.mxu0 0.0
        %510 = vmatprep.subr.mxu0 0.0
        %511 = vmatpush1.msra.mxu0 0.0
        %512 = vmatprep.subr.mxu0 0.0
        %513 = vmatpush1.msra.mxu0 0.0
        %514 = vmatprep.subr.mxu0 0.0
        %515 = vmatpush1.msra.mxu0 0.0
        %516 = vmatprep.subr.mxu0 0.0
        %517 = vmatpush1.msra.mxu0 0.0
        %518 = vmatprep.subr.mxu0 0.0
        %519 = vmatpush1.msra.mxu0 0.0
        %520 = vmatprep.subr.mxu0 0.0
        %521 = vmatpush1.msra.mxu0 0.0
        %522 = vmatprep.subr.mxu0 0.0
        %523 = vmatpush1.msra.mxu0 0.0
        %524 = vmatprep.subr.mxu0 0.0
        %525 = vmatpush1.msra.mxu0 0.0
        %526 = vmatprep.subr.mxu0 0.0
        %527 = vmatpush1.msra.mxu0 0.0
        %528 = vmatprep.subr.mxu0 0.0
        %529 = vmatpush1.msra.mxu0 0.0
        %530 = vmatprep.subr.mxu0 0.0
        %531 = vmatpush1.msra.mxu0 0.0
        %532 = vmatprep.subr.mxu0 0.0
        %533 = vmatpush1.msra.mxu0 0.0
        %534 = vmatprep.subr.mxu0 0.0
        %535 = vmatpush1.msra.mxu0 0.0
        %536 = vmatprep.subr.mxu0 0.0
        %537 = vmatpush1.msra.mxu0 0.0
        %538 = vmatprep.subr.mxu0 0.0
        %539 = vmatpush1.msra.mxu0 0.0
        %540 = vmatprep.subr.mxu0 0.0
        %541 = vmatpush1.msra.mxu0 0.0
        %542 = vmatprep.subr.mxu0 0.0
        %543 = vmatpush1.msra.mxu0 0.0
        %544 = vmatprep.subr.mxu0 0.0
        %545 = vmatpush1.msra.mxu0 0.0
        %546 = vmatprep.subr.mxu0 0.0
        %547 = vmatpush1.msra.mxu0 0.0
        %548 = vmatprep.subr.mxu0 0.0
        %549 = vmatpush1.msra.mxu0 0.0
        %550 = vmatprep.subr.mxu0 0.0
        %551 = vmatpush1.msra.mxu0 0.0
        %552 = vmatprep.subr.mxu0 0.0
        %553 = vmatpush1.msra.mxu0 0.0
        %554 = vmatprep.subr.mxu0 0.0
        %555 = vmatpush1.msra.mxu0 0.0
        %556 = vmatprep.subr.mxu0 0.0
        %557 = vmatpush1.msra.mxu0 0.0
        %558 = vmatprep.subr.mxu0 0.0
        %559 = vmatpush1.msra.mxu0 0.0
        %560 = vmatprep.subr.mxu0 0.0
        %561 = vmatpush1.msra.mxu0 0.0
        %562 = vmatprep.mubr.f32.mxu0 0.0
        %563 = vmatmul.mubr.f32.gmra.mrb[0].mxu0 %v489
        %v564 = vpop.f32.mrb[0].mxu0
        %v565 = vadd.f32 0.0, %v564
        %v566 = vpop.f32.mrb[0].mxu0
        %v567 = vadd.f32 0.0, %v566
        %568 = vdwg.mxu0
        %s569 = scalar_lea.vmem [#allocation6], 4
        %v570 = vld [vmem:[%s569] sm:$0xf]
        %v572 = vsel %vm487, %v570, 0
        %574 = vmatprep.subr.mxu0 %v496
        %575 = vmatpush1.msra.mxu0 %v493
        %576 = vmatprep.subr.mxu0 0.0
        %577 = vmatpush1.msra.mxu0 0.0
        %578 = vmatprep.subr.mxu0 0.0
        %579 = vmatpush1.msra.mxu0 0.0
        %580 = vmatprep.subr.mxu0 0.0
        %581 = vmatpush1.msra.mxu0 0.0
        %582 = vmatprep.subr.mxu0 0.0
        %583 = vmatpush1.msra.mxu0 0.0
        %584 = vmatprep.subr.mxu0 0.0
        %585 = vmatpush1.msra.mxu0 0.0
        %586 = vmatprep.subr.mxu0 0.0
        %587 = vmatpush1.msra.mxu0 0.0
        %588 = vmatprep.subr.mxu0 0.0
        %589 = vmatpush1.msra.mxu0 0.0
        %590 = vmatprep.subr.mxu0 0.0
        %591 = vmatpush1.msra.mxu0 0.0
        %592 = vmatprep.subr.mxu0 0.0
        %593 = vmatpush1.msra.mxu0 0.0
        %594 = vmatprep.subr.mxu0 0.0
        %595 = vmatpush1.msra.mxu0 0.0
        %596 = vmatprep.subr.mxu0 0.0
        %597 = vmatpush1.msra.mxu0 0.0
        %598 = vmatprep.subr.mxu0 0.0
        %599 = vmatpush1.msra.mxu0 0.0
        %600 = vmatprep.subr.mxu0 0.0
        %601 = vmatpush1.msra.mxu0 0.0
        %602 = vmatprep.subr.mxu0 0.0
        %603 = vmatpush1.msra.mxu0 0.0
        %604 = vmatprep.subr.mxu0 0.0
        %605 = vmatpush1.msra.mxu0 0.0
        %606 = vmatprep.subr.mxu0 0.0
        %607 = vmatpush1.msra.mxu0 0.0
        %608 = vmatprep.subr.mxu0 0.0
        %609 = vmatpush1.msra.mxu0 0.0
        %610 = vmatprep.subr.mxu0 0.0
        %611 = vmatpush1.msra.mxu0 0.0
        %612 = vmatprep.subr.mxu0 0.0
        %613 = vmatpush1.msra.mxu0 0.0
        %614 = vmatprep.subr.mxu0 0.0
        %615 = vmatpush1.msra.mxu0 0.0
        %616 = vmatprep.subr.mxu0 0.0
        %617 = vmatpush1.msra.mxu0 0.0
        %618 = vmatprep.subr.mxu0 0.0
        %619 = vmatpush1.msra.mxu0 0.0
        %620 = vmatprep.subr.mxu0 0.0
        %621 = vmatpush1.msra.mxu0 0.0
        %622 = vmatprep.subr.mxu0 0.0
        %623 = vmatpush1.msra.mxu0 0.0
        %624 = vmatprep.subr.mxu0 0.0
        %625 = vmatpush1.msra.mxu0 0.0
        %626 = vmatprep.subr.mxu0 0.0
        %627 = vmatpush1.msra.mxu0 0.0
        %628 = vmatprep.subr.mxu0 0.0
        %629 = vmatpush1.msra.mxu0 0.0
        %630 = vmatprep.subr.mxu0 0.0
        %631 = vmatpush1.msra.mxu0 0.0
        %632 = vmatprep.subr.mxu0 0.0
        %633 = vmatpush1.msra.mxu0 0.0
        %634 = vmatprep.subr.mxu0 0.0
        %635 = vmatpush1.msra.mxu0 0.0
        %636 = vmatprep.subr.mxu0 0.0
        %637 = vmatpush1.msra.mxu0 0.0
        %638 = vmatprep.mubr.f32.mxu0 0.0
        %639 = vmatmul.mubr.f32.gmra.mrb[0].mxu0 %v572
        %v640 = vpop.f32.mrb[0].mxu0
        %v641 = vadd.f32 0.0, %v640
        %v642 = vpop.f32.mrb[0].mxu0
        %v643 = vadd.f32 0.0, %v642
        %644 = vdwg.mxu0
        %v645 = vld [vmem:[%s431] sm:$0xff]
        %s646 = scalar_lea.vmem %s431, 8
        %v647 = vld [vmem:[%s646] sm:$0xff]
        %v648 = vld [vmem:[%s3] sm:$0xf]
        %649 = vrot.lane.b32.xlu0 %v641, 1
        %v650 = vpop.permute.xlu0 %649
        %651 = vrot.lane.b32.xlu0 %v643, 1
        %v652 = vpop.permute.xlu0 %651
        %vm653 = vcmp.lt.s32.totalorder %v448, 1
        %v654 = vsel %vm653, %v650, %v652
        %v655 = vsel %vm653, %v652, %v650
        %v656 = vld [vmem:[%s4] sm:$0xf]
        %v658 = vcombine.high %v647, %v647
        %660 = vrot.lane.b32.xlu0 %v647, 1
        %v661 = vpop.permute.xlu0 %660
        %662 = vrot.lane.b32.xlu0 %v658, 1
        %v663 = vpop.permute.xlu0 %662
        %v664 = vsel %vm653, %v661, %v663
        %v665 = vsel %vm653, %v663, %v661
        %vm666 = vcmask 31744
        %v668 = vsel %vm666, %v656, 0
        %vm670 = vcmask 1043456
        %v672 = vsel %vm670, %v665, 0
        %v675 = vsel %vm670, %v664, 0
        %677 = vmatprep.subr.mxu0 %v675
        %678 = vmatpush1.msra.mxu0 %v672
        %679 = vmatprep.subr.mxu0 0.0
        %680 = vmatpush1.msra.mxu0 0.0
        %681 = vmatprep.subr.mxu0 0.0
        %682 = vmatpush1.msra.mxu0 0.0
        %683 = vmatprep.subr.mxu0 0.0
        %684 = vmatpush1.msra.mxu0 0.0
        %685 = vmatprep.subr.mxu0 0.0
        %686 = vmatpush1.msra.mxu0 0.0
        %687 = vmatprep.subr.mxu0 0.0
        %688 = vmatpush1.msra.mxu0 0.0
        %689 = vmatprep.subr.mxu0 0.0
        %690 = vmatpush1.msra.mxu0 0.0
        %691 = vmatprep.subr.mxu0 0.0
        %692 = vmatpush1.msra.mxu0 0.0
        %693 = vmatprep.subr.mxu0 0.0
        %694 = vmatpush1.msra.mxu0 0.0
        %695 = vmatprep.subr.mxu0 0.0
        %696 = vmatpush1.msra.mxu0 0.0
        %697 = vmatprep.subr.mxu0 0.0
        %698 = vmatpush1.msra.mxu0 0.0
        %699 = vmatprep.subr.mxu0 0.0
        %700 = vmatpush1.msra.mxu0 0.0
        %701 = vmatprep.subr.mxu0 0.0
        %702 = vmatpush1.msra.mxu0 0.0
        %703 = vmatprep.subr.mxu0 0.0
        %704 = vmatpush1.msra.mxu0 0.0
        %705 = vmatprep.subr.mxu0 0.0
        %706 = vmatpush1.msra.mxu0 0.0
        %707 = vmatprep.subr.mxu0 0.0
        %708 = vmatpush1.msra.mxu0 0.0
        %709 = vmatprep.subr.mxu0 0.0
        %710 = vmatpush1.msra.mxu0 0.0
        %711 = vmatprep.subr.mxu0 0.0
        %712 = vmatpush1.msra.mxu0 0.0
        %713 = vmatprep.subr.mxu0 0.0
        %714 = vmatpush1.msra.mxu0 0.0
        %715 = vmatprep.subr.mxu0 0.0
        %716 = vmatpush1.msra.mxu0 0.0
        %717 = vmatprep.subr.mxu0 0.0
        %718 = vmatpush1.msra.mxu0 0.0
        %719 = vmatprep.subr.mxu0 0.0
        %720 = vmatpush1.msra.mxu0 0.0
        %721 = vmatprep.subr.mxu0 0.0
        %722 = vmatpush1.msra.mxu0 0.0
        %723 = vmatprep.subr.mxu0 0.0
        %724 = vmatpush1.msra.mxu0 0.0
        %725 = vmatprep.subr.mxu0 0.0
        %726 = vmatpush1.msra.mxu0 0.0
        %727 = vmatprep.subr.mxu0 0.0
        %728 = vmatpush1.msra.mxu0 0.0
        %729 = vmatprep.subr.mxu0 0.0
        %730 = vmatpush1.msra.mxu0 0.0
        %731 = vmatprep.subr.mxu0 0.0
        %732 = vmatpush1.msra.mxu0 0.0
        %733 = vmatprep.subr.mxu0 0.0
        %734 = vmatpush1.msra.mxu0 0.0
        %735 = vmatprep.subr.mxu0 0.0
        %736 = vmatpush1.msra.mxu0 0.0
        %737 = vmatprep.subr.mxu0 0.0
        %738 = vmatpush1.msra.mxu0 0.0
        %739 = vmatprep.subr.mxu0 0.0
        %740 = vmatpush1.msra.mxu0 0.0
        %741 = vmatprep.mubr.f32.mxu0 0.0
        %742 = vmatmul.mubr.f32.gmra.mrb[0].mxu0 %v668
        %v743 = vpop.f32.mrb[0].mxu0
        %v744 = vadd.f32 0.0, %v743
        %v745 = vpop.f32.mrb[0].mxu0
        %v746 = vadd.f32 0.0, %v745
        %747 = vdwg.mxu0
        %v749 = vsel %vm666, %v648, 0
        %v752 = vsel %vm670, %v655, 0
        %v755 = vsel %vm670, %v654, 0
        %757 = vmatprep.subr.mxu0 %v755
        %758 = vmatpush1.msra.mxu0 %v752
        %759 = vmatprep.subr.mxu0 0.0
        %760 = vmatpush1.msra.mxu0 0.0
        %761 = vmatprep.subr.mxu0 0.0
        %762 = vmatpush1.msra.mxu0 0.0
        %763 = vmatprep.subr.mxu0 0.0
        %764 = vmatpush1.msra.mxu0 0.0
        %765 = vmatprep.subr.mxu0 0.0
        %766 = vmatpush1.msra.mxu0 0.0
        %767 = vmatprep.subr.mxu0 0.0
        %768 = vmatpush1.msra.mxu0 0.0
        %769 = vmatprep.subr.mxu0 0.0
        %770 = vmatpush1.msra.mxu0 0.0
        %771 = vmatprep.subr.mxu0 0.0
        %772 = vmatpush1.msra.mxu0 0.0
        %773 = vmatprep.subr.mxu0 0.0
        %774 = vmatpush1.msra.mxu0 0.0
        %775 = vmatprep.subr.mxu0 0.0
        %776 = vmatpush1.msra.mxu0 0.0
        %777 = vmatprep.subr.mxu0 0.0
        %778 = vmatpush1.msra.mxu0 0.0
        %779 = vmatprep.subr.mxu0 0.0
        %780 = vmatpush1.msra.mxu0 0.0
        %781 = vmatprep.subr.mxu0 0.0
        %782 = vmatpush1.msra.mxu0 0.0
        %783 = vmatprep.subr.mxu0 0.0
        %784 = vmatpush1.msra.mxu0 0.0
        %785 = vmatprep.subr.mxu0 0.0
        %786 = vmatpush1.msra.mxu0 0.0
        %787 = vmatprep.subr.mxu0 0.0
        %788 = vmatpush1.msra.mxu0 0.0
        %789 = vmatprep.subr.mxu0 0.0
        %790 = vmatpush1.msra.mxu0 0.0
        %791 = vmatprep.subr.mxu0 0.0
        %792 = vmatpush1.msra.mxu0 0.0
        %793 = vmatprep.subr.mxu0 0.0
        %794 = vmatpush1.msra.mxu0 0.0
        %795 = vmatprep.subr.mxu0 0.0
        %796 = vmatpush1.msra.mxu0 0.0
        %797 = vmatprep.subr.mxu0 0.0
        %798 = vmatpush1.msra.mxu0 0.0
        %799 = vmatprep.subr.mxu0 0.0
        %800 = vmatpush1.msra.mxu0 0.0
        %801 = vmatprep.subr.mxu0 0.0
        %802 = vmatpush1.msra.mxu0 0.0
        %803 = vmatprep.subr.mxu0 0.0
        %804 = vmatpush1.msra.mxu0 0.0
        %805 = vmatprep.subr.mxu0 0.0
        %806 = vmatpush1.msra.mxu0 0.0
        %807 = vmatprep.subr.mxu0 0.0
        %808 = vmatpush1.msra.mxu0 0.0
        %809 = vmatprep.subr.mxu0 0.0
        %810 = vmatpush1.msra.mxu0 0.0
        %811 = vmatprep.subr.mxu0 0.0
        %812 = vmatpush1.msra.mxu0 0.0
        %813 = vmatprep.subr.mxu0 0.0
        %814 = vmatpush1.msra.mxu0 0.0
        %815 = vmatprep.subr.mxu0 0.0
        %816 = vmatpush1.msra.mxu0 0.0
        %817 = vmatprep.subr.mxu0 0.0
        %818 = vmatpush1.msra.mxu0 0.0
        %819 = vmatprep.subr.mxu0 0.0
        %820 = vmatpush1.msra.mxu0 0.0
        %821 = vmatprep.mubr.f32.mxu0 0.0
        %822 = vmatmul.mubr.f32.gmra.mrb[0].mxu0 %v749
        %v823 = vpop.f32.mrb[0].mxu0
        %v824 = vadd.f32 %v744, %v823
        %v825 = vpop.f32.mrb[0].mxu0
        %v826 = vadd.f32 %v746, %v825
        %827 = vdwg.mxu0
        %s828 = scalar_lea.vmem %s3, 4
        %v829 = vld [vmem:[%s828] sm:$0xf]
        %v831 = vsel %vm666, %v829, 0
        %v834 = vsel %vm670, %v565, 0
        %v837 = vsel %vm670, %v567, 0
        %839 = vmatprep.subr.mxu0 %v837
        %840 = vmatpush1.msra.mxu0 %v834
        %841 = vmatprep.subr.mxu0 0.0
        %842 = vmatpush1.msra.mxu0 0.0
        %843 = vmatprep.subr.mxu0 0.0
        %844 = vmatpush1.msra.mxu0 0.0
        %845 = vmatprep.subr.mxu0 0.0
        %846 = vmatpush1.msra.mxu0 0.0
        %847 = vmatprep.subr.mxu0 0.0
        %848 = vmatpush1.msra.mxu0 0.0
        %849 = vmatprep.subr.mxu0 0.0
        %850 = vmatpush1.msra.mxu0 0.0
        %851 = vmatprep.subr.mxu0 0.0
        %852 = vmatpush1.msra.mxu0 0.0
        %853 = vmatprep.subr.mxu0 0.0
        %854 = vmatpush1.msra.mxu0 0.0
        %855 = vmatprep.subr.mxu0 0.0
        %856 = vmatpush1.msra.mxu0 0.0
        %857 = vmatprep.subr.mxu0 0.0
        %858 = vmatpush1.msra.mxu0 0.0
        %859 = vmatprep.subr.mxu0 0.0
        %860 = vmatpush1.msra.mxu0 0.0
        %861 = vmatprep.subr.mxu0 0.0
        %862 = vmatpush1.msra.mxu0 0.0
        %863 = vmatprep.subr.mxu0 0.0
        %864 = vmatpush1.msra.mxu0 0.0
        %865 = vmatprep.subr.mxu0 0.0
        %866 = vmatpush1.msra.mxu0 0.0
        %867 = vmatprep.subr.mxu0 0.0
        %868 = vmatpush1.msra.mxu0 0.0
        %869 = vmatprep.subr.mxu0 0.0
        %870 = vmatpush1.msra.mxu0 0.0
        %871 = vmatprep.subr.mxu0 0.0
        %872 = vmatpush1.msra.mxu0 0.0
        %873 = vmatprep.subr.mxu0 0.0
        %874 = vmatpush1.msra.mxu0 0.0
        %875 = vmatprep.subr.mxu0 0.0
        %876 = vmatpush1.msra.mxu0 0.0
        %877 = vmatprep.subr.mxu0 0.0
        %878 = vmatpush1.msra.mxu0 0.0
        %879 = vmatprep.subr.mxu0 0.0
        %880 = vmatpush1.msra.mxu0 0.0
        %881 = vmatprep.subr.mxu0 0.0
        %882 = vmatpush1.msra.mxu0 0.0
        %883 = vmatprep.subr.mxu0 0.0
        %884 = vmatpush1.msra.mxu0 0.0
        %885 = vmatprep.subr.mxu0 0.0
        %886 = vmatpush1.msra.mxu0 0.0
        %887 = vmatprep.subr.mxu0 0.0
        %888 = vmatpush1.msra.mxu0 0.0
        %889 = vmatprep.subr.mxu0 0.0
        %890 = vmatpush1.msra.mxu0 0.0
        %891 = vmatprep.subr.mxu0 0.0
        %892 = vmatpush1.msra.mxu0 0.0
        %893 = vmatprep.subr.mxu0 0.0
        %894 = vmatpush1.msra.mxu0 0.0
        %895 = vmatprep.subr.mxu0 0.0
        %896 = vmatpush1.msra.mxu0 0.0
        %897 = vmatprep.subr.mxu0 0.0
        %898 = vmatpush1.msra.mxu0 0.0
        %899 = vmatprep.subr.mxu0 0.0
        %900 = vmatpush1.msra.mxu0 0.0
        %901 = vmatprep.subr.mxu0 0.0
        %902 = vmatpush1.msra.mxu0 0.0
        %903 = vmatprep.mubr.f32.mxu0 0.0
        %904 = vmatmul.mubr.f32.gmra.mrb[0].mxu0 %v831
        %v905 = vpop.f32.mrb[0].mxu0
        %v906 = vadd.f32 0.0, %v905
        %v907 = vpop.f32.mrb[0].mxu0
        %v908 = vadd.f32 0.0, %v907
        %909 = vdwg.mxu0
        %v910 = vadd.f32 %v824, %v906
        %v911 = vadd.f32 %v826, %v908
        %s912 = scalar_lea.vmem %s4, 4
        %v913 = vld [vmem:[%s912] sm:$0xf]
        %v915 = vcombine.high %v645, %v645
        %v917 = vsel %vm666, %v913, 0
        %v919 = vsel %vm670, %v645, 0
        %v921 = vsel %vm670, %v915, 0
        %923 = vmatprep.subr.mxu0 %v921
        %924 = vmatpush1.msra.mxu0 %v919
        %925 = vmatprep.subr.mxu0 0.0
        %926 = vmatpush1.msra.mxu0 0.0
        %927 = vmatprep.subr.mxu0 0.0
        %928 = vmatpush1.msra.mxu0 0.0
        %929 = vmatprep.subr.mxu0 0.0
        %930 = vmatpush1.msra.mxu0 0.0
        %931 = vmatprep.subr.mxu0 0.0
        %932 = vmatpush1.msra.mxu0 0.0
        %933 = vmatprep.subr.mxu0 0.0
        %934 = vmatpush1.msra.mxu0 0.0
        %935 = vmatprep.subr.mxu0 0.0
        %936 = vmatpush1.msra.mxu0 0.0
        %937 = vmatprep.subr.mxu0 0.0
        %938 = vmatpush1.msra.mxu0 0.0
        %939 = vmatprep.subr.mxu0 0.0
        %940 = vmatpush1.msra.mxu0 0.0
        %941 = vmatprep.subr.mxu0 0.0
        %942 = vmatpush1.msra.mxu0 0.0
        %943 = vmatprep.subr.mxu0 0.0
        %944 = vmatpush1.msra.mxu0 0.0
        %945 = vmatprep.subr.mxu0 0.0
        %946 = vmatpush1.msra.mxu0 0.0
        %947 = vmatprep.subr.mxu0 0.0
        %948 = vmatpush1.msra.mxu0 0.0
        %949 = vmatprep.subr.mxu0 0.0
        %950 = vmatpush1.msra.mxu0 0.0
        %951 = vmatprep.subr.mxu0 0.0
        %952 = vmatpush1.msra.mxu0 0.0
        %953 = vmatprep.subr.mxu0 0.0
        %954 = vmatpush1.msra.mxu0 0.0
        %955 = vmatprep.subr.mxu0 0.0
        %956 = vmatpush1.msra.mxu0 0.0
        %957 = vmatprep.subr.mxu0 0.0
        %958 = vmatpush1.msra.mxu0 0.0
        %959 = vmatprep.subr.mxu0 0.0
        %960 = vmatpush1.msra.mxu0 0.0
        %961 = vmatprep.subr.mxu0 0.0
        %962 = vmatpush1.msra.mxu0 0.0
        %963 = vmatprep.subr.mxu0 0.0
        %964 = vmatpush1.msra.mxu0 0.0
        %965 = vmatprep.subr.mxu0 0.0
        %966 = vmatpush1.msra.mxu0 0.0
        %967 = vmatprep.subr.mxu0 0.0
        %968 = vmatpush1.msra.mxu0 0.0
        %969 = vmatprep.subr.mxu0 0.0
        %970 = vmatpush1.msra.mxu0 0.0
        %971 = vmatprep.subr.mxu0 0.0
        %972 = vmatpush1.msra.mxu0 0.0
        %973 = vmatprep.subr.mxu0 0.0
        %974 = vmatpush1.msra.mxu0 0.0
        %975 = vmatprep.subr.mxu0 0.0
        %976 = vmatpush1.msra.mxu0 0.0
        %977 = vmatprep.subr.mxu0 0.0
        %978 = vmatpush1.msra.mxu0 0.0
        %979 = vmatprep.subr.mxu0 0.0
        %980 = vmatpush1.msra.mxu0 0.0
        %981 = vmatprep.subr.mxu0 0.0
        %982 = vmatpush1.msra.mxu0 0.0
        %983 = vmatprep.subr.mxu0 0.0
        %984 = vmatpush1.msra.mxu0 0.0
        %985 = vmatprep.subr.mxu0 0.0
        %986 = vmatpush1.msra.mxu0 0.0
        %987 = vmatprep.mubr.f32.mxu0 0.0
        %988 = vmatmul.mubr.f32.gmra.mrb[0].mxu0 %v917
        %v989 = vpop.f32.mrb[0].mxu0
        %v990 = vadd.f32 0.0, %v989
        %v991 = vpop.f32.mrb[0].mxu0
        %v992 = vadd.f32 0.0, %v991
        %993 = vdwg.mxu0
        %v994 = vadd.f32 %v910, %v990
        %v995 = vadd.f32 %v911, %v992
        %s996 = scalar_lea.vmem %s3, 8
        %v997 = vld [vmem:[%s996] sm:$0xf]
        %v999 = vsel %vm666, %v997, 0
        %v1002 = vsel %vm670, %v641, 0
        %v1005 = vsel %vm670, %v643, 0
        %1007 = vmatprep.subr.mxu0 %v1005
        %1008 = vmatpush1.msra.mxu0 %v1002
        %1009 = vmatprep.subr.mxu0 0.0
        %1010 = vmatpush1.msra.mxu0 0.0
        %1011 = vmatprep.subr.mxu0 0.0
        %1012 = vmatpush1.msra.mxu0 0.0
        %1013 = vmatprep.subr.mxu0 0.0
        %1014 = vmatpush1.msra.mxu0 0.0
        %1015 = vmatprep.subr.mxu0 0.0
        %1016 = vmatpush1.msra.mxu0 0.0
        %1017 = vmatprep.subr.mxu0 0.0
        %1018 = vmatpush1.msra.mxu0 0.0
        %1019 = vmatprep.subr.mxu0 0.0
        %1020 = vmatpush1.msra.mxu0 0.0
        %1021 = vmatprep.subr.mxu0 0.0
        %1022 = vmatpush1.msra.mxu0 0.0
        %1023 = vmatprep.subr.mxu0 0.0
        %1024 = vmatpush1.msra.mxu0 0.0
        %1025 = vmatprep.subr.mxu0 0.0
        %1026 = vmatpush1.msra.mxu0 0.0
        %1027 = vmatprep.subr.mxu0 0.0
        %1028 = vmatpush1.msra.mxu0 0.0
        %1029 = vmatprep.subr.mxu0 0.0
        %1030 = vmatpush1.msra.mxu0 0.0
        %1031 = vmatprep.subr.mxu0 0.0
        %1032 = vmatpush1.msra.mxu0 0.0
        %1033 = vmatprep.subr.mxu0 0.0
        %1034 = vmatpush1.msra.mxu0 0.0
        %1035 = vmatprep.subr.mxu0 0.0
        %1036 = vmatpush1.msra.mxu0 0.0
        %1037 = vmatprep.subr.mxu0 0.0
        %1038 = vmatpush1.msra.mxu0 0.0
        %1039 = vmatprep.subr.mxu0 0.0
        %1040 = vmatpush1.msra.mxu0 0.0
        %1041 = vmatprep.subr.mxu0 0.0
        %1042 = vmatpush1.msra.mxu0 0.0
        %1043 = vmatprep.subr.mxu0 0.0
        %1044 = vmatpush1.msra.mxu0 0.0
        %1045 = vmatprep.subr.mxu0 0.0
        %1046 = vmatpush1.msra.mxu0 0.0
        %1047 = vmatprep.subr.mxu0 0.0
        %1048 = vmatpush1.msra.mxu0 0.0
        %1049 = vmatprep.subr.mxu0 0.0
        %1050 = vmatpush1.msra.mxu0 0.0
        %1051 = vmatprep.subr.mxu0 0.0
        %1052 = vmatpush1.msra.mxu0 0.0
        %1053 = vmatprep.subr.mxu0 0.0
        %1054 = vmatpush1.msra.mxu0 0.0
        %1055 = vmatprep.subr.mxu0 0.0
        %1056 = vmatpush1.msra.mxu0 0.0
        %1057 = vmatprep.subr.mxu0 0.0
        %1058 = vmatpush1.msra.mxu0 0.0
        %1059 = vmatprep.subr.mxu0 0.0
        %1060 = vmatpush1.msra.mxu0 0.0
        %1061 = vmatprep.subr.mxu0 0.0
        %1062 = vmatpush1.msra.mxu0 0.0
        %1063 = vmatprep.subr.mxu0 0.0
        %1064 = vmatpush1.msra.mxu0 0.0
        %1065 = vmatprep.subr.mxu0 0.0
        %1066 = vmatpush1.msra.mxu0 0.0
        %1067 = vmatprep.subr.mxu0 0.0
        %1068 = vmatpush1.msra.mxu0 0.0
        %1069 = vmatprep.subr.mxu0 0.0
        %1070 = vmatpush1.msra.mxu0 0.0
        %1071 = vmatprep.mubr.f32.mxu0 0.0
        %1072 = vmatmul.mubr.f32.gmra.mrb[0].mxu0 %v999
        %v1073 = vpop.f32.mrb[0].mxu0
        %v1074 = vadd.f32 0.0, %v1073
        %v1075 = vpop.f32.mrb[0].mxu0
        %v1076 = vadd.f32 0.0, %v1075
        %1077 = vdwg.mxu0
        %v1078 = vadd.f32 %v994, %v1074
        %v1079 = vadd.f32 %v995, %v1076
        %s1080 = scalar_lea.vmem %s4, 8
        %v1081 = vld [vmem:[%s1080] sm:$0xf]
        %v1083 = vsel %vm666, %v1081, 0
        %v1085 = vsel %vm670, %v647, 0
        %v1087 = vsel %vm670, %v658, 0
        %1089 = vmatprep.subr.mxu0 %v1087
        %1090 = vmatpush1.msra.mxu0 %v1085
        %1091 = vmatprep.subr.mxu0 0.0
        %1092 = vmatpush1.msra.mxu0 0.0
        %1093 = vmatprep.subr.mxu0 0.0
        %1094 = vmatpush1.msra.mxu0 0.0
        %1095 = vmatprep.subr.mxu0 0.0
        %1096 = vmatpush1.msra.mxu0 0.0
        %1097 = vmatprep.subr.mxu0 0.0
        %1098 = vmatpush1.msra.mxu0 0.0
        %1099 = vmatprep.subr.mxu0 0.0
        %1100 = vmatpush1.msra.mxu0 0.0
        %1101 = vmatprep.subr.mxu0 0.0
        %1102 = vmatpush1.msra.mxu0 0.0
        %1103 = vmatprep.subr.mxu0 0.0
        %1104 = vmatpush1.msra.mxu0 0.0
        %1105 = vmatprep.subr.mxu0 0.0
        %1106 = vmatpush1.msra.mxu0 0.0
        %1107 = vmatprep.subr.mxu0 0.0
        %1108 = vmatpush1.msra.mxu0 0.0
        %1109 = vmatprep.subr.mxu0 0.0
        %1110 = vmatpush1.msra.mxu0 0.0
        %1111 = vmatprep.subr.mxu0 0.0
        %1112 = vmatpush1.msra.mxu0 0.0
        %1113 = vmatprep.subr.mxu0 0.0
        %1114 = vmatpush1.msra.mxu0 0.0
        %1115 = vmatprep.subr.mxu0 0.0
        %1116 = vmatpush1.msra.mxu0 0.0
        %1117 = vmatprep.subr.mxu0 0.0
        %1118 = vmatpush1.msra.mxu0 0.0
        %1119 = vmatprep.subr.mxu0 0.0
        %1120 = vmatpush1.msra.mxu0 0.0
        %1121 = vmatprep.subr.mxu0 0.0
        %1122 = vmatpush1.msra.mxu0 0.0
        %1123 = vmatprep.subr.mxu0 0.0
        %1124 = vmatpush1.msra.mxu0 0.0
        %1125 = vmatprep.subr.mxu0 0.0
        %1126 = vmatpush1.msra.mxu0 0.0
        %1127 = vmatprep.subr.mxu0 0.0
        %1128 = vmatpush1.msra.mxu0 0.0
        %1129 = vmatprep.subr.mxu0 0.0
        %1130 = vmatpush1.msra.mxu0 0.0
        %1131 = vmatprep.subr.mxu0 0.0
        %1132 = vmatpush1.msra.mxu0 0.0
        %1133 = vmatprep.subr.mxu0 0.0
        %1134 = vmatpush1.msra.mxu0 0.0
        %1135 = vmatprep.subr.mxu0 0.0
        %1136 = vmatpush1.msra.mxu0 0.0
        %1137 = vmatprep.subr.mxu0 0.0
        %1138 = vmatpush1.msra.mxu0 0.0
        %1139 = vmatprep.subr.mxu0 0.0
        %1140 = vmatpush1.msra.mxu0 0.0
        %1141 = vmatprep.subr.mxu0 0.0
        %1142 = vmatpush1.msra.mxu0 0.0
        %1143 = vmatprep.subr.mxu0 0.0
        %1144 = vmatpush1.msra.mxu0 0.0
        %1145 = vmatprep.subr.mxu0 0.0
        %1146 = vmatpush1.msra.mxu0 0.0
        %1147 = vmatprep.subr.mxu0 0.0
        %1148 = vmatpush1.msra.mxu0 0.0
        %1149 = vmatprep.subr.mxu0 0.0
        %1150 = vmatpush1.msra.mxu0 0.0
        %1151 = vmatprep.subr.mxu0 0.0
        %1152 = vmatpush1.msra.mxu0 0.0
        %1153 = vmatprep.mubr.f32.mxu0 0.0
        %1154 = vmatmul.mubr.f32.gmra.mrb[0].mxu0 %v1083
        %v1155 = vpop.f32.mrb[0].mxu0
        %v1156 = vadd.f32 0.0, %v1155
        %v1157 = vpop.f32.mrb[0].mxu0
        %v1158 = vadd.f32 0.0, %v1157
        %1159 = vdwg.mxu0
        %v1160 = vadd.f32 %v1078, %v1156
        %v1161 = vadd.f32 %v1079, %v1158
        %1162 = vmatprep.subr.mxu0 %v921
        %1163 = vmatpush1.msra.mxu0 %v919
        %1164 = vmatprep.subr.mxu0 0.0
        %1165 = vmatpush1.msra.mxu0 0.0
        %1166 = vmatprep.subr.mxu0 0.0
        %1167 = vmatpush1.msra.mxu0 0.0
        %1168 = vmatprep.subr.mxu0 0.0
        %1169 = vmatpush1.msra.mxu0 0.0
        %1170 = vmatprep.subr.mxu0 0.0
        %1171 = vmatpush1.msra.mxu0 0.0
        %1172 = vmatprep.subr.mxu0 0.0
        %1173 = vmatpush1.msra.mxu0 0.0
        %1174 = vmatprep.subr.mxu0 0.0
        %1175 = vmatpush1.msra.mxu0 0.0
        %1176 = vmatprep.subr.mxu0 0.0
        %1177 = vmatpush1.msra.mxu0 0.0
        %1178 = vmatprep.subr.mxu0 0.0
        %1179 = vmatpush1.msra.mxu0 0.0
        %1180 = vmatprep.subr.mxu0 0.0
        %1181 = vmatpush1.msra.mxu0 0.0
        %1182 = vmatprep.subr.mxu0 0.0
        %1183 = vmatpush1.msra.mxu0 0.0
        %1184 = vmatprep.subr.mxu0 0.0
        %1185 = vmatpush1.msra.mxu0 0.0
        %1186 = vmatprep.subr.mxu0 0.0
        %1187 = vmatpush1.msra.mxu0 0.0
        %1188 = vmatprep.subr.mxu0 0.0
        %1189 = vmatpush1.msra.mxu0 0.0
        %1190 = vmatprep.subr.mxu0 0.0
        %1191 = vmatpush1.msra.mxu0 0.0
        %1192 = vmatprep.subr.mxu0 0.0
        %1193 = vmatpush1.msra.mxu0 0.0
        %1194 = vmatprep.subr.mxu0 0.0
        %1195 = vmatpush1.msra.mxu0 0.0
        %1196 = vmatprep.subr.mxu0 0.0
        %1197 = vmatpush1.msra.mxu0 0.0
        %1198 = vmatprep.subr.mxu0 0.0
        %1199 = vmatpush1.msra.mxu0 0.0
        %1200 = vmatprep.subr.mxu0 0.0
        %1201 = vmatpush1.msra.mxu0 0.0
        %1202 = vmatprep.subr.mxu0 0.0
        %1203 = vmatpush1.msra.mxu0 0.0
        %1204 = vmatprep.subr.mxu0 0.0
        %1205 = vmatpush1.msra.mxu0 0.0
        %1206 = vmatprep.subr.mxu0 0.0
        %1207 = vmatpush1.msra.mxu0 0.0
        %1208 = vmatprep.subr.mxu0 0.0
        %1209 = vmatpush1.msra.mxu0 0.0
        %1210 = vmatprep.subr.mxu0 0.0
        %1211 = vmatpush1.msra.mxu0 0.0
        %1212 = vmatprep.subr.mxu0 0.0
        %1213 = vmatpush1.msra.mxu0 0.0
        %1214 = vmatprep.subr.mxu0 0.0
        %1215 = vmatpush1.msra.mxu0 0.0
        %1216 = vmatprep.subr.mxu0 0.0
        %1217 = vmatpush1.msra.mxu0 0.0
        %1218 = vmatprep.subr.mxu0 0.0
        %1219 = vmatpush1.msra.mxu0 0.0
        %1220 = vmatprep.subr.mxu0 0.0
        %1221 = vmatpush1.msra.mxu0 0.0
        %1222 = vmatprep.subr.mxu0 0.0
        %1223 = vmatpush1.msra.mxu0 0.0
        %1224 = vmatprep.subr.mxu0 0.0
        %1225 = vmatpush1.msra.mxu0 0.0
        %1226 = vmatprep.mubr.f32.mxu0 0.0
        %1227 = vmatmul.mubr.f32.gmra.mrb[0].mxu0 %v668
        %v1228 = vpop.f32.mrb[0].mxu0
        %v1229 = vadd.f32 0.0, %v1228
        %v1230 = vpop.f32.mrb[0].mxu0
        %v1231 = vadd.f32 0.0, %v1230
        %1232 = vdwg.mxu0
        %1233 = vmatprep.subr.mxu0 %v837
        %1234 = vmatpush1.msra.mxu0 %v834
        %1235 = vmatprep.subr.mxu0 0.0
        %1236 = vmatpush1.msra.mxu0 0.0
        %1237 = vmatprep.subr.mxu0 0.0
        %1238 = vmatpush1.msra.mxu0 0.0
        %1239 = vmatprep.subr.mxu0 0.0
        %1240 = vmatpush1.msra.mxu0 0.0
        %1241 = vmatprep.subr.mxu0 0.0
        %1242 = vmatpush1.msra.mxu0 0.0
        %1243 = vmatprep.subr.mxu0 0.0
        %1244 = vmatpush1.msra.mxu0 0.0
        %1245 = vmatprep.subr.mxu0 0.0
        %1246 = vmatpush1.msra.mxu0 0.0
        %1247 = vmatprep.subr.mxu0 0.0
        %1248 = vmatpush1.msra.mxu0 0.0
        %1249 = vmatprep.subr.mxu0 0.0
        %1250 = vmatpush1.msra.mxu0 0.0
        %1251 = vmatprep.subr.mxu0 0.0
        %1252 = vmatpush1.msra.mxu0 0.0
        %1253 = vmatprep.subr.mxu0 0.0
        %1254 = vmatpush1.msra.mxu0 0.0
        %1255 = vmatprep.subr.mxu0 0.0
        %1256 = vmatpush1.msra.mxu0 0.0
        %1257 = vmatprep.subr.mxu0 0.0
        %1258 = vmatpush1.msra.mxu0 0.0
        %1259 = vmatprep.subr.mxu0 0.0
        %1260 = vmatpush1.msra.mxu0 0.0
        %1261 = vmatprep.subr.mxu0 0.0
        %1262 = vmatpush1.msra.mxu0 0.0
        %1263 = vmatprep.subr.mxu0 0.0
        %1264 = vmatpush1.msra.mxu0 0.0
        %1265 = vmatprep.subr.mxu0 0.0
        %1266 = vmatpush1.msra.mxu0 0.0
        %1267 = vmatprep.subr.mxu0 0.0
        %1268 = vmatpush1.msra.mxu0 0.0
        %1269 = vmatprep.subr.mxu0 0.0
        %1270 = vmatpush1.msra.mxu0 0.0
        %1271 = vmatprep.subr.mxu0 0.0
        %1272 = vmatpush1.msra.mxu0 0.0
        %1273 = vmatprep.subr.mxu0 0.0
        %1274 = vmatpush1.msra.mxu0 0.0
        %1275 = vmatprep.subr.mxu0 0.0
        %1276 = vmatpush1.msra.mxu0 0.0
        %1277 = vmatprep.subr.mxu0 0.0
        %1278 = vmatpush1.msra.mxu0 0.0
        %1279 = vmatprep.subr.mxu0 0.0
        %1280 = vmatpush1.msra.mxu0 0.0
        %1281 = vmatprep.subr.mxu0 0.0
        %1282 = vmatpush1.msra.mxu0 0.0
        %1283 = vmatprep.subr.mxu0 0.0
        %1284 = vmatpush1.msra.mxu0 0.0
        %1285 = vmatprep.subr.mxu0 0.0
        %1286 = vmatpush1.msra.mxu0 0.0
        %1287 = vmatprep.subr.mxu0 0.0
        %1288 = vmatpush1.msra.mxu0 0.0
        %1289 = vmatprep.subr.mxu0 0.0
        %1290 = vmatpush1.msra.mxu0 0.0
        %1291 = vmatprep.subr.mxu0 0.0
        %1292 = vmatpush1.msra.mxu0 0.0
        %1293 = vmatprep.subr.mxu0 0.0
        %1294 = vmatpush1.msra.mxu0 0.0
        %1295 = vmatprep.subr.mxu0 0.0
        %1296 = vmatpush1.msra.mxu0 0.0
        %1297 = vmatprep.mubr.f32.mxu0 0.0
        %1298 = vmatmul.mubr.f32.gmra.mrb[0].mxu0 %v749
        %v1299 = vpop.f32.mrb[0].mxu0
        %v1300 = vadd.f32 %v1229, %v1299
        %v1301 = vpop.f32.mrb[0].mxu0
        %v1302 = vadd.f32 %v1231, %v1301
        %1303 = vdwg.mxu0
        %1304 = vmatprep.subr.mxu0 %v1005
        %1305 = vmatpush1.msra.mxu0 %v1002
        %1306 = vmatprep.subr.mxu0 0.0
        %1307 = vmatpush1.msra.mxu0 0.0
        %1308 = vmatprep.subr.mxu0 0.0
        %1309 = vmatpush1.msra.mxu0 0.0
        %1310 = vmatprep.subr.mxu0 0.0
        %1311 = vmatpush1.msra.mxu0 0.0
        %1312 = vmatprep.subr.mxu0 0.0
        %1313 = vmatpush1.msra.mxu0 0.0
        %1314 = vmatprep.subr.mxu0 0.0
        %1315 = vmatpush1.msra.mxu0 0.0
        %1316 = vmatprep.subr.mxu0 0.0
        %1317 = vmatpush1.msra.mxu0 0.0
        %1318 = vmatprep.subr.mxu0 0.0
        %1319 = vmatpush1.msra.mxu0 0.0
        %1320 = vmatprep.subr.mxu0 0.0
        %1321 = vmatpush1.msra.mxu0 0.0
        %1322 = vmatprep.subr.mxu0 0.0
        %1323 = vmatpush1.msra.mxu0 0.0
        %1324 = vmatprep.subr.mxu0 0.0
        %1325 = vmatpush1.msra.mxu0 0.0
        %1326 = vmatprep.subr.mxu0 0.0
        %1327 = vmatpush1.msra.mxu0 0.0
        %1328 = vmatprep.subr.mxu0 0.0
        %1329 = vmatpush1.msra.mxu0 0.0
        %1330 = vmatprep.subr.mxu0 0.0
        %1331 = vmatpush1.msra.mxu0 0.0
        %1332 = vmatprep.subr.mxu0 0.0
        %1333 = vmatpush1.msra.mxu0 0.0
        %1334 = vmatprep.subr.mxu0 0.0
        %1335 = vmatpush1.msra.mxu0 0.0
        %1336 = vmatprep.subr.mxu0 0.0
        %1337 = vmatpush1.msra.mxu0 0.0
        %1338 = vmatprep.subr.mxu0 0.0
        %1339 = vmatpush1.msra.mxu0 0.0
        %1340 = vmatprep.subr.mxu0 0.0
        %1341 = vmatpush1.msra.mxu0 0.0
        %1342 = vmatprep.subr.mxu0 0.0
        %1343 = vmatpush1.msra.mxu0 0.0
        %1344 = vmatprep.subr.mxu0 0.0
        %1345 = vmatpush1.msra.mxu0 0.0
        %1346 = vmatprep.subr.mxu0 0.0
        %1347 = vmatpush1.msra.mxu0 0.0
        %1348 = vmatprep.subr.mxu0 0.0
        %1349 = vmatpush1.msra.mxu0 0.0
        %1350 = vmatprep.subr.mxu0 0.0
        %1351 = vmatpush1.msra.mxu0 0.0
        %1352 = vmatprep.subr.mxu0 0.0
        %1353 = vmatpush1.msra.mxu0 0.0
        %1354 = vmatprep.subr.mxu0 0.0
        %1355 = vmatpush1.msra.mxu0 0.0
        %1356 = vmatprep.subr.mxu0 0.0
        %1357 = vmatpush1.msra.mxu0 0.0
        %1358 = vmatprep.subr.mxu0 0.0
        %1359 = vmatpush1.msra.mxu0 0.0
        %1360 = vmatprep.subr.mxu0 0.0
        %1361 = vmatpush1.msra.mxu0 0.0
        %1362 = vmatprep.subr.mxu0 0.0
        %1363 = vmatpush1.msra.mxu0 0.0
        %1364 = vmatprep.subr.mxu0 0.0
        %1365 = vmatpush1.msra.mxu0 0.0
        %1366 = vmatprep.subr.mxu0 0.0
        %1367 = vmatpush1.msra.mxu0 0.0
        %1368 = vmatprep.mubr.f32.mxu0 0.0
        %1369 = vmatmul.mubr.f32.gmra.mrb[0].mxu0 %v831
        %v1370 = vpop.f32.mrb[0].mxu0
        %v1371 = vadd.f32 0.0, %v1370
        %v1372 = vpop.f32.mrb[0].mxu0
        %v1373 = vadd.f32 0.0, %v1372
        %1374 = vdwg.mxu0
        %v1375 = vadd.f32 %v1300, %v1371
        %v1376 = vadd.f32 %v1302, %v1373
        %1377 = vmatprep.subr.mxu0 %v1087
        %1378 = vmatpush1.msra.mxu0 %v1085
        %1379 = vmatprep.subr.mxu0 0.0
        %1380 = vmatpush1.msra.mxu0 0.0
        %1381 = vmatprep.subr.mxu0 0.0
        %1382 = vmatpush1.msra.mxu0 0.0
        %1383 = vmatprep.subr.mxu0 0.0
        %1384 = vmatpush1.msra.mxu0 0.0
        %1385 = vmatprep.subr.mxu0 0.0
        %1386 = vmatpush1.msra.mxu0 0.0
        %1387 = vmatprep.subr.mxu0 0.0
        %1388 = vmatpush1.msra.mxu0 0.0
        %1389 = vmatprep.subr.mxu0 0.0
        %1390 = vmatpush1.msra.mxu0 0.0
        %1391 = vmatprep.subr.mxu0 0.0
        %1392 = vmatpush1.msra.mxu0 0.0
        %1393 = vmatprep.subr.mxu0 0.0
        %1394 = vmatpush1.msra.mxu0 0.0
        %1395 = vmatprep.subr.mxu0 0.0
        %1396 = vmatpush1.msra.mxu0 0.0
        %1397 = vmatprep.subr.mxu0 0.0
        %1398 = vmatpush1.msra.mxu0 0.0
        %1399 = vmatprep.subr.mxu0 0.0
        %1400 = vmatpush1.msra.mxu0 0.0
        %1401 = vmatprep.subr.mxu0 0.0
        %1402 = vmatpush1.msra.mxu0 0.0
        %1403 = vmatprep.subr.mxu0 0.0
        %1404 = vmatpush1.msra.mxu0 0.0
        %1405 = vmatprep.subr.mxu0 0.0
        %1406 = vmatpush1.msra.mxu0 0.0
        %1407 = vmatprep.subr.mxu0 0.0
        %1408 = vmatpush1.msra.mxu0 0.0
        %1409 = vmatprep.subr.mxu0 0.0
        %1410 = vmatpush1.msra.mxu0 0.0
        %1411 = vmatprep.subr.mxu0 0.0
        %1412 = vmatpush1.msra.mxu0 0.0
        %1413 = vmatprep.subr.mxu0 0.0
        %1414 = vmatpush1.msra.mxu0 0.0
        %1415 = vmatprep.subr.mxu0 0.0
        %1416 = vmatpush1.msra.mxu0 0.0
        %1417 = vmatprep.subr.mxu0 0.0
        %1418 = vmatpush1.msra.mxu0 0.0
        %1419 = vmatprep.subr.mxu0 0.0
        %1420 = vmatpush1.msra.mxu0 0.0
        %1421 = vmatprep.subr.mxu0 0.0
        %1422 = vmatpush1.msra.mxu0 0.0
        %1423 = vmatprep.subr.mxu0 0.0
        %1424 = vmatpush1.msra.mxu0 0.0
        %1425 = vmatprep.subr.mxu0 0.0
        %1426 = vmatpush1.msra.mxu0 0.0
        %1427 = vmatprep.subr.mxu0 0.0
        %1428 = vmatpush1.msra.mxu0 0.0
        %1429 = vmatprep.subr.mxu0 0.0
        %1430 = vmatpush1.msra.mxu0 0.0
        %1431 = vmatprep.subr.mxu0 0.0
        %1432 = vmatpush1.msra.mxu0 0.0
        %1433 = vmatprep.subr.mxu0 0.0
        %1434 = vmatpush1.msra.mxu0 0.0
        %1435 = vmatprep.subr.mxu0 0.0
        %1436 = vmatpush1.msra.mxu0 0.0
        %1437 = vmatprep.subr.mxu0 0.0
        %1438 = vmatpush1.msra.mxu0 0.0
        %1439 = vmatprep.subr.mxu0 0.0
        %1440 = vmatpush1.msra.mxu0 0.0
        %1441 = vmatprep.mubr.f32.mxu0 0.0
        %1442 = vmatmul.mubr.f32.gmra.mrb[0].mxu0 %v917
        %v1443 = vpop.f32.mrb[0].mxu0
        %v1444 = vadd.f32 0.0, %v1443
        %v1445 = vpop.f32.mrb[0].mxu0
        %v1446 = vadd.f32 0.0, %v1445
        %1447 = vdwg.mxu0
        %v1448 = vadd.f32 %v1375, %v1444
        %v1449 = vadd.f32 %v1376, %v1446
        %1450 = vrot.lane.b32.xlu0 %v565, 127
        %v1451 = vpop.permute.xlu0 %1450
        %1452 = vrot.lane.b32.xlu0 %v567, 127
        %v1453 = vpop.permute.xlu0 %1452
        %vm1454 = vcmp.lt.s32.totalorder %v448, 127
        %v1455 = vsel %vm1454, %v1451, %v1453
        %v1456 = vsel %vm1454, %v1453, %v1451
        %v1458 = vsel %vm670, %v1455, 0
        %v1461 = vsel %vm670, %v1456, 0
        %1463 = vmatprep.subr.mxu0 %v1461
        %1464 = vmatpush1.msra.mxu0 %v1458
        %1465 = vmatprep.subr.mxu0 0.0
        %1466 = vmatpush1.msra.mxu0 0.0
        %1467 = vmatprep.subr.mxu0 0.0
        %1468 = vmatpush1.msra.mxu0 0.0
        %1469 = vmatprep.subr.mxu0 0.0
        %1470 = vmatpush1.msra.mxu0 0.0
        %1471 = vmatprep.subr.mxu0 0.0
        %1472 = vmatpush1.msra.mxu0 0.0
        %1473 = vmatprep.subr.mxu0 0.0
        %1474 = vmatpush1.msra.mxu0 0.0
        %1475 = vmatprep.subr.mxu0 0.0
        %1476 = vmatpush1.msra.mxu0 0.0
        %1477 = vmatprep.subr.mxu0 0.0
        %1478 = vmatpush1.msra.mxu0 0.0
        %1479 = vmatprep.subr.mxu0 0.0
        %1480 = vmatpush1.msra.mxu0 0.0
        %1481 = vmatprep.subr.mxu0 0.0
        %1482 = vmatpush1.msra.mxu0 0.0
        %1483 = vmatprep.subr.mxu0 0.0
        %1484 = vmatpush1.msra.mxu0 0.0
        %1485 = vmatprep.subr.mxu0 0.0
        %1486 = vmatpush1.msra.mxu0 0.0
        %1487 = vmatprep.subr.mxu0 0.0
        %1488 = vmatpush1.msra.mxu0 0.0
        %1489 = vmatprep.subr.mxu0 0.0
        %1490 = vmatpush1.msra.mxu0 0.0
        %1491 = vmatprep.subr.mxu0 0.0
        %1492 = vmatpush1.msra.mxu0 0.0
        %1493 = vmatprep.subr.mxu0 0.0
        %1494 = vmatpush1.msra.mxu0 0.0
        %1495 = vmatprep.subr.mxu0 0.0
        %1496 = vmatpush1.msra.mxu0 0.0
        %1497 = vmatprep.subr.mxu0 0.0
        %1498 = vmatpush1.msra.mxu0 0.0
        %1499 = vmatprep.subr.mxu0 0.0
        %1500 = vmatpush1.msra.mxu0 0.0
        %1501 = vmatprep.subr.mxu0 0.0
        %1502 = vmatpush1.msra.mxu0 0.0
        %1503 = vmatprep.subr.mxu0 0.0
        %1504 = vmatpush1.msra.mxu0 0.0
        %1505 = vmatprep.subr.mxu0 0.0
        %1506 = vmatpush1.msra.mxu0 0.0
        %1507 = vmatprep.subr.mxu0 0.0
        %1508 = vmatpush1.msra.mxu0 0.0
        %1509 = vmatprep.subr.mxu0 0.0
        %1510 = vmatpush1.msra.mxu0 0.0
        %1511 = vmatprep.subr.mxu0 0.0
        %1512 = vmatpush1.msra.mxu0 0.0
        %1513 = vmatprep.subr.mxu0 0.0
        %1514 = vmatpush1.msra.mxu0 0.0
        %1515 = vmatprep.subr.mxu0 0.0
        %1516 = vmatpush1.msra.mxu0 0.0
        %1517 = vmatprep.subr.mxu0 0.0
        %1518 = vmatpush1.msra.mxu0 0.0
        %1519 = vmatprep.subr.mxu0 0.0
        %1520 = vmatpush1.msra.mxu0 0.0
        %1521 = vmatprep.subr.mxu0 0.0
        %1522 = vmatpush1.msra.mxu0 0.0
        %1523 = vmatprep.subr.mxu0 0.0
        %1524 = vmatpush1.msra.mxu0 0.0
        %1525 = vmatprep.subr.mxu0 0.0
        %1526 = vmatpush1.msra.mxu0 0.0
        %1527 = vmatprep.mubr.f32.mxu0 0.0
        %1528 = vmatmul.mubr.f32.gmra.mrb[0].mxu0 %v999
        %v1529 = vpop.f32.mrb[0].mxu0
        %v1530 = vadd.f32 0.0, %v1529
        %v1531 = vpop.f32.mrb[0].mxu0
        %v1532 = vadd.f32 0.0, %v1531
        %1533 = vdwg.mxu0
        %v1534 = vadd.f32 %v1448, %v1530
        %v1535 = vadd.f32 %v1449, %v1532
        %1537 = vrot.lane.b32.xlu0 %v645, 127
        %v1538 = vpop.permute.xlu0 %1537
        %1539 = vrot.lane.b32.xlu0 %v915, 127
        %v1540 = vpop.permute.xlu0 %1539
        %v1541 = vsel %vm1454, %v1538, %v1540
        %v1542 = vsel %vm1454, %v1540, %v1538
        %v1544 = vsel %vm670, %v1541, 0
        %v1547 = vsel %vm670, %v1542, 0
        %1549 = vmatprep.subr.mxu0 %v1547
        %1550 = vmatpush1.msra.mxu0 %v1544
        %1551 = vmatprep.subr.mxu0 0.0
        %1552 = vmatpush1.msra.mxu0 0.0
        %1553 = vmatprep.subr.mxu0 0.0
        %1554 = vmatpush1.msra.mxu0 0.0
        %1555 = vmatprep.subr.mxu0 0.0
        %1556 = vmatpush1.msra.mxu0 0.0
        %1557 = vmatprep.subr.mxu0 0.0
        %1558 = vmatpush1.msra.mxu0 0.0
        %1559 = vmatprep.subr.mxu0 0.0
        %1560 = vmatpush1.msra.mxu0 0.0
        %1561 = vmatprep.subr.mxu0 0.0
        %1562 = vmatpush1.msra.mxu0 0.0
        %1563 = vmatprep.subr.mxu0 0.0
        %1564 = vmatpush1.msra.mxu0 0.0
        %1565 = vmatprep.subr.mxu0 0.0
        %1566 = vmatpush1.msra.mxu0 0.0
        %1567 = vmatprep.subr.mxu0 0.0
        %1568 = vmatpush1.msra.mxu0 0.0
        %1569 = vmatprep.subr.mxu0 0.0
        %1570 = vmatpush1.msra.mxu0 0.0
        %1571 = vmatprep.subr.mxu0 0.0
        %1572 = vmatpush1.msra.mxu0 0.0
        %1573 = vmatprep.subr.mxu0 0.0
        %1574 = vmatpush1.msra.mxu0 0.0
        %1575 = vmatprep.subr.mxu0 0.0
        %1576 = vmatpush1.msra.mxu0 0.0
        %1577 = vmatprep.subr.mxu0 0.0
        %1578 = vmatpush1.msra.mxu0 0.0
        %1579 = vmatprep.subr.mxu0 0.0
        %1580 = vmatpush1.msra.mxu0 0.0
        %1581 = vmatprep.subr.mxu0 0.0
        %1582 = vmatpush1.msra.mxu0 0.0
        %1583 = vmatprep.subr.mxu0 0.0
        %1584 = vmatpush1.msra.mxu0 0.0
        %1585 = vmatprep.subr.mxu0 0.0
        %1586 = vmatpush1.msra.mxu0 0.0
        %1587 = vmatprep.subr.mxu0 0.0
        %1588 = vmatpush1.msra.mxu0 0.0
        %1589 = vmatprep.subr.mxu0 0.0
        %1590 = vmatpush1.msra.mxu0 0.0
        %1591 = vmatprep.subr.mxu0 0.0
        %1592 = vmatpush1.msra.mxu0 0.0
        %1593 = vmatprep.subr.mxu0 0.0
        %1594 = vmatpush1.msra.mxu0 0.0
        %1595 = vmatprep.subr.mxu0 0.0
        %1596 = vmatpush1.msra.mxu0 0.0
        %1597 = vmatprep.subr.mxu0 0.0
        %1598 = vmatpush1.msra.mxu0 0.0
        %1599 = vmatprep.subr.mxu0 0.0
        %1600 = vmatpush1.msra.mxu0 0.0
        %1601 = vmatprep.subr.mxu0 0.0
        %1602 = vmatpush1.msra.mxu0 0.0
        %1603 = vmatprep.subr.mxu0 0.0
        %1604 = vmatpush1.msra.mxu0 0.0
        %1605 = vmatprep.subr.mxu0 0.0
        %1606 = vmatpush1.msra.mxu0 0.0
        %1607 = vmatprep.subr.mxu0 0.0
        %1608 = vmatpush1.msra.mxu0 0.0
        %1609 = vmatprep.subr.mxu0 0.0
        %1610 = vmatpush1.msra.mxu0 0.0
        %1611 = vmatprep.subr.mxu0 0.0
        %1612 = vmatpush1.msra.mxu0 0.0
        %1613 = vmatprep.mubr.f32.mxu0 0.0
        %1614 = vmatmul.mubr.f32.gmra.mrb[0].mxu0 %v1083
        %v1615 = vpop.f32.mrb[0].mxu0
        %v1616 = vadd.f32 0.0, %v1615
        %v1617 = vpop.f32.mrb[0].mxu0
        %v1618 = vadd.f32 0.0, %v1617
        %1619 = vdwg.mxu0
        %v1620 = vadd.f32 %v1534, %v1616
        %v1621 = vadd.f32 %v1535, %v1618
        // Predicated region
        $region69: #{tpu_custom_call.1} parent=59 // pred_check
          %p1622 = pneg %p435
        $region70: #{tpu_custom_call.1} parent=59 // pred_check_branch
          %1624 = sbr.rel (%p1622) target = $region72
        $region71: #{tpu_custom_call.1} parent=59 // pred_region
          %v1625 = vmul.f32 %v1160, %v482
          %v1626 = vmul.f32 %v1161, %v483
          %v1627 = vld [vmem:[#allocation2] sm:$0xf]
          %v1628 = vsel %vm670, %v1625, 0.0
          %v1629 = vsel %vm670, %v1626, 0.0
          %v1630 = vadd.f32 %v1628, %v1629
          %1631 = vadd.xlane.f32.xlu0 %v1630
          %v1632 = vpop.xlane.xlu0 %1631
          %v1633 = vadd.f32 %v1627, %v1632
          %vm1634 = vcmask 3072
          %1635 = vst.msk [vmem:[#allocation2] sm:$0xf] %vm1634, %v1633
          %v1636 = vld [vmem:[#allocation3] sm:$0xf]
          %v1637 = vmul.f32 %v1625, %v1625
          %v1638 = vmul.f32 %v1626, %v1626
          %v1639 = vsel %vm670, %v1637, 0.0
          %v1640 = vsel %vm670, %v1638, 0.0
          %v1641 = vadd.f32 %v1639, %v1640
          %1642 = vadd.xlane.f32.xlu0 %v1641
          %v1643 = vpop.xlane.xlu0 %1642
          %v1644 = vadd.f32 %v1636, %v1643
          %1645 = vst.msk [vmem:[#allocation3] sm:$0xf] %vm1634, %v1644
          %v1646 = vmul.f32 %v1620, %v482
          %v1647 = vmul.f32 %v1621, %v483
          %v1648 = vld [vmem:[#allocation2] sm:$0xf]
          %v1649 = vsel %vm670, %v1646, 0.0
          %v1650 = vsel %vm670, %v1647, 0.0
          %v1651 = vadd.f32 %v1649, %v1650
          %1652 = vadd.xlane.f32.xlu0 %v1651
          %v1653 = vpop.xlane.xlu0 %1652
          %v1654 = vadd.f32 %v1648, %v1653
          %1655 = vst.msk [vmem:[#allocation2] sm:$0xf] %vm1634, %v1654
          %v1656 = vld [vmem:[#allocation3] sm:$0xf]
          %v1657 = vmul.f32 %v1646, %v1646
          %v1658 = vmul.f32 %v1647, %v1647
          %v1659 = vsel %vm670, %v1657, 0.0
          %v1660 = vsel %vm670, %v1658, 0.0
          %v1661 = vadd.f32 %v1659, %v1660
          %1662 = vadd.xlane.f32.xlu0 %v1661
          %v1663 = vpop.xlane.xlu0 %1662
          %v1664 = vadd.f32 %v1656, %v1663
          %1665 = vst.msk [vmem:[#allocation3] sm:$0xf] %vm1634, %v1664
        $region72: #{tpu_custom_call.1} parent=59 // pred_fallthru
          _
        %p1666 = scmp.ge.s32.totalorder %s30, 1
        // Predicated region
        $region73: #{tpu_custom_call.1} parent=59 // pred_check
          %p1667 = pneg %p1666
        $region74: #{tpu_custom_call.1} parent=59 // pred_check_branch
          %1669 = sbr.rel (%p1667) target = $region76
        $region75: #{tpu_custom_call.1} parent=59 // pred_region
          %v1670 = vld [vmem:[#allocation2] sm:$0xf]
          %v1671 = vmul.f32 %v1670, 0.03125
          %v1672 = vld [vmem:[#allocation3] sm:$0xf]
          %v1673 = vmul.f32 %v1672, 0.03125
          %v1674 = vmul.f32 %v1671, %v1671
          %v1675 = vsub.f32 %v1673, %v1674
          %v1676 = vld [vmem:[%s6] sm:$0xf]
          %v1677 = vadd.f32 %v1675, 1e-05
          %v1678 = vrsqrt.pop %v1677
          %v1679 = vmul.f32 %v1676, %v1678
          %v1680 = vld [vmem:[%s7] sm:$0xf]
          %v1681 = vmul.f32 %v1671, %v1679
          %v1682 = vsub.f32 %v1680, %v1681
          %1684 = vset.pattern.permute.xlu0 0
          %1685 = vperm.xlu0 %1684, %v1679
          %v1686 = vpop.permute.xlu0 %1685
          %v1688 = vmul.f32 %v1160, %v1686
          %v1689 = vmul.f32 %v1161, %v1686
          %1691 = vset.pattern.permute.xlu0 0
          %1692 = vperm.xlu0 %1691, %v1682
          %v1693 = vpop.permute.xlu0 %1692
          %v1695 = vadd.f32 %v1688, %v1693
          %v1696 = vadd.f32 %v1689, %v1693
          %v1697 = vmax.f32 %v1695, 0.0
          %v1698 = vmax.f32 %v1696, 0.0
          %v1699 = vmul.f32 %v1697, %v482
          %v1700 = vmul.f32 %v1698, %v483
          %v1701 = vmul.f32 %v1620, %v1686
          %v1702 = vmul.f32 %v1621, %v1686
          %v1703 = vadd.f32 %v1701, %v1693
          %v1704 = vadd.f32 %v1702, %v1693
          %v1705 = vmax.f32 %v1703, 0.0
          %v1706 = vmax.f32 %v1704, 0.0
          %v1707 = vmul.f32 %v1705, %v482
          %v1708 = vmul.f32 %v1706, %v483
          %v1709 = vld [vmem:[%s5] sm:$0x3f]
          %1710 = vrot.lane.b32.xlu0 %v1707, 1
          %v1711 = vpop.permute.xlu0 %1710
          %1712 = vrot.lane.b32.xlu0 %v1708, 1
          %v1713 = vpop.permute.xlu0 %1712
          %v1714 = vsel %vm653, %v1711, %v1713
          %v1715 = vsel %vm653, %v1713, %v1711
          %s1716 = scalar_lea.vmem %s5, 8
          %v1717 = vld [vmem:[%s1716] sm:$0x3f]
          %v1719 = vsel %vm666, %v1717, 0
          %v1722 = vsel %vm670, %v1699, 0
          %v1725 = vsel %vm670, %v1700, 0
          %1727 = vmatprep.subr.mxu0 %v1725
          %1728 = vmatpush1.msra.mxu0 %v1722
          %1729 = vmatprep.subr.mxu0 0.0
          %1730 = vmatpush1.msra.mxu0 0.0
          %1731 = vmatprep.subr.mxu0 0.0
          %1732 = vmatpush1.msra.mxu0 0.0
          %1733 = vmatprep.subr.mxu0 0.0
          %1734 = vmatpush1.msra.mxu0 0.0
          %1735 = vmatprep.subr.mxu0 0.0
          %1736 = vmatpush1.msra.mxu0 0.0
          %1737 = vmatprep.subr.mxu0 0.0
          %1738 = vmatpush1.msra.mxu0 0.0
          %1739 = vmatprep.subr.mxu0 0.0
          %1740 = vmatpush1.msra.mxu0 0.0
          %1741 = vmatprep.subr.mxu0 0.0
          %1742 = vmatpush1.msra.mxu0 0.0
          %1743 = vmatprep.subr.mxu0 0.0
          %1744 = vmatpush1.msra.mxu0 0.0
          %1745 = vmatprep.subr.mxu0 0.0
          %1746 = vmatpush1.msra.mxu0 0.0
          %1747 = vmatprep.subr.mxu0 0.0
          %1748 = vmatpush1.msra.mxu0 0.0
          %1749 = vmatprep.subr.mxu0 0.0
          %1750 = vmatpush1.msra.mxu0 0.0
          %1751 = vmatprep.subr.mxu0 0.0
          %1752 = vmatpush1.msra.mxu0 0.0
          %1753 = vmatprep.subr.mxu0 0.0
          %1754 = vmatpush1.msra.mxu0 0.0
          %1755 = vmatprep.subr.mxu0 0.0
          %1756 = vmatpush1.msra.mxu0 0.0
          %1757 = vmatprep.subr.mxu0 0.0
          %1758 = vmatpush1.msra.mxu0 0.0
          %1759 = vmatprep.subr.mxu0 0.0
          %1760 = vmatpush1.msra.mxu0 0.0
          %1761 = vmatprep.subr.mxu0 0.0
          %1762 = vmatpush1.msra.mxu0 0.0
          %1763 = vmatprep.subr.mxu0 0.0
          %1764 = vmatpush1.msra.mxu0 0.0
          %1765 = vmatprep.subr.mxu0 0.0
          %1766 = vmatpush1.msra.mxu0 0.0
          %1767 = vmatprep.subr.mxu0 0.0
          %1768 = vmatpush1.msra.mxu0 0.0
          %1769 = vmatprep.subr.mxu0 0.0
          %1770 = vmatpush1.msra.mxu0 0.0
          %1771 = vmatprep.subr.mxu0 0.0
          %1772 = vmatpush1.msra.mxu0 0.0
          %1773 = vmatprep.subr.mxu0 0.0
          %1774 = vmatpush1.msra.mxu0 0.0
          %1775 = vmatprep.subr.mxu0 0.0
          %1776 = vmatpush1.msra.mxu0 0.0
          %1777 = vmatprep.subr.mxu0 0.0
          %1778 = vmatpush1.msra.mxu0 0.0
          %1779 = vmatprep.subr.mxu0 0.0
          %1780 = vmatpush1.msra.mxu0 0.0
          %1781 = vmatprep.subr.mxu0 0.0
          %1782 = vmatpush1.msra.mxu0 0.0
          %1783 = vmatprep.subr.mxu0 0.0
          %1784 = vmatpush1.msra.mxu0 0.0
          %1785 = vmatprep.subr.mxu0 0.0
          %1786 = vmatpush1.msra.mxu0 0.0
          %1787 = vmatprep.subr.mxu0 0.0
          %1788 = vmatpush1.msra.mxu0 0.0
          %1789 = vmatprep.subr.mxu0 0.0
          %1790 = vmatpush1.msra.mxu0 0.0
          %1791 = vmatprep.mubr.f32.mxu0 0.0
          %1792 = vmatmul.mubr.f32.gmra.mrb[0].mxu0 %v1719
          %v1793 = vpop.f32.mrb[0].mxu0
          %v1794 = vadd.f32 0.0, %v1793
          %v1795 = vpop.f32.mrb[0].mxu0
          %v1796 = vadd.f32 0.0, %v1795
          %1797 = vdwg.mxu0
          %v1799 = vsel %vm666, %v1709, 0
          %v1802 = vsel %vm670, %v1715, 0
          %v1805 = vsel %vm670, %v1714, 0
          %1807 = vmatprep.subr.mxu0 %v1805
          %1808 = vmatpush1.msra.mxu0 %v1802
          %1809 = vmatprep.subr.mxu0 0.0
          %1810 = vmatpush1.msra.mxu0 0.0
          %1811 = vmatprep.subr.mxu0 0.0
          %1812 = vmatpush1.msra.mxu0 0.0
          %1813 = vmatprep.subr.mxu0 0.0
          %1814 = vmatpush1.msra.mxu0 0.0
          %1815 = vmatprep.subr.mxu0 0.0
          %1816 = vmatpush1.msra.mxu0 0.0
          %1817 = vmatprep.subr.mxu0 0.0
          %1818 = vmatpush1.msra.mxu0 0.0
          %1819 = vmatprep.subr.mxu0 0.0
          %1820 = vmatpush1.msra.mxu0 0.0
          %1821 = vmatprep.subr.mxu0 0.0
          %1822 = vmatpush1.msra.mxu0 0.0
          %1823 = vmatprep.subr.mxu0 0.0
          %1824 = vmatpush1.msra.mxu0 0.0
          %1825 = vmatprep.subr.mxu0 0.0
          %1826 = vmatpush1.msra.mxu0 0.0
          %1827 = vmatprep.subr.mxu0 0.0
          %1828 = vmatpush1.msra.mxu0 0.0
          %1829 = vmatprep.subr.mxu0 0.0
          %1830 = vmatpush1.msra.mxu0 0.0
          %1831 = vmatprep.subr.mxu0 0.0
          %1832 = vmatpush1.msra.mxu0 0.0
          %1833 = vmatprep.subr.mxu0 0.0
          %1834 = vmatpush1.msra.mxu0 0.0
          %1835 = vmatprep.subr.mxu0 0.0
          %1836 = vmatpush1.msra.mxu0 0.0
          %1837 = vmatprep.subr.mxu0 0.0
          %1838 = vmatpush1.msra.mxu0 0.0
          %1839 = vmatprep.subr.mxu0 0.0
          %1840 = vmatpush1.msra.mxu0 0.0
          %1841 = vmatprep.subr.mxu0 0.0
          %1842 = vmatpush1.msra.mxu0 0.0
          %1843 = vmatprep.subr.mxu0 0.0
          %1844 = vmatpush1.msra.mxu0 0.0
          %1845 = vmatprep.subr.mxu0 0.0
          %1846 = vmatpush1.msra.mxu0 0.0
          %1847 = vmatprep.subr.mxu0 0.0
          %1848 = vmatpush1.msra.mxu0 0.0
          %1849 = vmatprep.subr.mxu0 0.0
          %1850 = vmatpush1.msra.mxu0 0.0
          %1851 = vmatprep.subr.mxu0 0.0
          %1852 = vmatpush1.msra.mxu0 0.0
          %1853 = vmatprep.subr.mxu0 0.0
          %1854 = vmatpush1.msra.mxu0 0.0
          %1855 = vmatprep.subr.mxu0 0.0
          %1856 = vmatpush1.msra.mxu0 0.0
          %1857 = vmatprep.subr.mxu0 0.0
          %1858 = vmatpush1.msra.mxu0 0.0
          %1859 = vmatprep.subr.mxu0 0.0
          %1860 = vmatpush1.msra.mxu0 0.0
          %1861 = vmatprep.subr.mxu0 0.0
          %1862 = vmatpush1.msra.mxu0 0.0
          %1863 = vmatprep.subr.mxu0 0.0
          %1864 = vmatpush1.msra.mxu0 0.0
          %1865 = vmatprep.subr.mxu0 0.0
          %1866 = vmatpush1.msra.mxu0 0.0
          %1867 = vmatprep.subr.mxu0 0.0
          %1868 = vmatpush1.msra.mxu0 0.0
          %1869 = vmatprep.subr.mxu0 0.0
          %1870 = vmatpush1.msra.mxu0 0.0
          %1871 = vmatprep.mubr.f32.mxu0 0.0
          %1872 = vmatmul.mubr.f32.gmra.mrb[0].mxu0 %v1799
          %v1873 = vpop.f32.mrb[0].mxu0
          %v1874 = vadd.f32 %v1794, %v1873
          %v1875 = vpop.f32.mrb[0].mxu0
          %v1876 = vadd.f32 %v1796, %v1875
          %1877 = vdwg.mxu0
          %s1878 = scalar_lea.vmem %s5, 16
          %v1879 = vld [vmem:[%s1878] sm:$0x3f]
          %v1881 = vsel %vm666, %v1879, 0
          %v1884 = vsel %vm670, %v1707, 0
          %v1887 = vsel %vm670, %v1708, 0
          %1889 = vmatprep.subr.mxu0 %v1887
          %1890 = vmatpush1.msra.mxu0 %v1884
          %1891 = vmatprep.subr.mxu0 0.0
          %1892 = vmatpush1.msra.mxu0 0.0
          %1893 = vmatprep.subr.mxu0 0.0
          %1894 = vmatpush1.msra.mxu0 0.0
          %1895 = vmatprep.subr.mxu0 0.0
          %1896 = vmatpush1.msra.mxu0 0.0
          %1897 = vmatprep.subr.mxu0 0.0
          %1898 = vmatpush1.msra.mxu0 0.0
          %1899 = vmatprep.subr.mxu0 0.0
          %1900 = vmatpush1.msra.mxu0 0.0
          %1901 = vmatprep.subr.mxu0 0.0
          %1902 = vmatpush1.msra.mxu0 0.0
          %1903 = vmatprep.subr.mxu0 0.0
          %1904 = vmatpush1.msra.mxu0 0.0
          %1905 = vmatprep.subr.mxu0 0.0
          %1906 = vmatpush1.msra.mxu0 0.0
          %1907 = vmatprep.subr.mxu0 0.0
          %1908 = vmatpush1.msra.mxu0 0.0
          %1909 = vmatprep.subr.mxu0 0.0
          %1910 = vmatpush1.msra.mxu0 0.0
          %1911 = vmatprep.subr.mxu0 0.0
          %1912 = vmatpush1.msra.mxu0 0.0
          %1913 = vmatprep.subr.mxu0 0.0
          %1914 = vmatpush1.msra.mxu0 0.0
          %1915 = vmatprep.subr.mxu0 0.0
          %1916 = vmatpush1.msra.mxu0 0.0
          %1917 = vmatprep.subr.mxu0 0.0
          %1918 = vmatpush1.msra.mxu0 0.0
          %1919 = vmatprep.subr.mxu0 0.0
          %1920 = vmatpush1.msra.mxu0 0.0
          %1921 = vmatprep.subr.mxu0 0.0
          %1922 = vmatpush1.msra.mxu0 0.0
          %1923 = vmatprep.subr.mxu0 0.0
          %1924 = vmatpush1.msra.mxu0 0.0
          %1925 = vmatprep.subr.mxu0 0.0
          %1926 = vmatpush1.msra.mxu0 0.0
          %1927 = vmatprep.subr.mxu0 0.0
          %1928 = vmatpush1.msra.mxu0 0.0
          %1929 = vmatprep.subr.mxu0 0.0
          %1930 = vmatpush1.msra.mxu0 0.0
          %1931 = vmatprep.subr.mxu0 0.0
          %1932 = vmatpush1.msra.mxu0 0.0
          %1933 = vmatprep.subr.mxu0 0.0
          %1934 = vmatpush1.msra.mxu0 0.0
          %1935 = vmatprep.subr.mxu0 0.0
          %1936 = vmatpush1.msra.mxu0 0.0
          %1937 = vmatprep.subr.mxu0 0.0
          %1938 = vmatpush1.msra.mxu0 0.0
          %1939 = vmatprep.subr.mxu0 0.0
          %1940 = vmatpush1.msra.mxu0 0.0
          %1941 = vmatprep.subr.mxu0 0.0
          %1942 = vmatpush1.msra.mxu0 0.0
          %1943 = vmatprep.subr.mxu0 0.0
          %1944 = vmatpush1.msra.mxu0 0.0
          %1945 = vmatprep.subr.mxu0 0.0
          %1946 = vmatpush1.msra.mxu0 0.0
          %1947 = vmatprep.subr.mxu0 0.0
          %1948 = vmatpush1.msra.mxu0 0.0
          %1949 = vmatprep.subr.mxu0 0.0
          %1950 = vmatpush1.msra.mxu0 0.0
          %1951 = vmatprep.subr.mxu0 0.0
          %1952 = vmatpush1.msra.mxu0 0.0
          %1953 = vmatprep.mubr.f32.mxu0 0.0
          %1954 = vmatmul.mubr.f32.gmra.mrb[0].mxu0 %v1881
          %v1955 = vpop.f32.mrb[0].mxu0
          %v1956 = vadd.f32 0.0, %v1955
          %v1957 = vpop.f32.mrb[0].mxu0
          %v1958 = vadd.f32 0.0, %v1957
          %1959 = vdwg.mxu0
          %v1960 = vadd.f32 %v1874, %v1956
          %v1961 = vadd.f32 %v1876, %v1958
          %1962 = vmatprep.subr.mxu0 %v1887
          %1963 = vmatpush1.msra.mxu0 %v1884
          %1964 = vmatprep.subr.mxu0 0.0
          %1965 = vmatpush1.msra.mxu0 0.0
          %1966 = vmatprep.subr.mxu0 0.0
          %1967 = vmatpush1.msra.mxu0 0.0
          %1968 = vmatprep.subr.mxu0 0.0
          %1969 = vmatpush1.msra.mxu0 0.0
          %1970 = vmatprep.subr.mxu0 0.0
          %1971 = vmatpush1.msra.mxu0 0.0
          %1972 = vmatprep.subr.mxu0 0.0
          %1973 = vmatpush1.msra.mxu0 0.0
          %1974 = vmatprep.subr.mxu0 0.0
          %1975 = vmatpush1.msra.mxu0 0.0
          %1976 = vmatprep.subr.mxu0 0.0
          %1977 = vmatpush1.msra.mxu0 0.0
          %1978 = vmatprep.subr.mxu0 0.0
          %1979 = vmatpush1.msra.mxu0 0.0
          %1980 = vmatprep.subr.mxu0 0.0
          %1981 = vmatpush1.msra.mxu0 0.0
          %1982 = vmatprep.subr.mxu0 0.0
          %1983 = vmatpush1.msra.mxu0 0.0
          %1984 = vmatprep.subr.mxu0 0.0
          %1985 = vmatpush1.msra.mxu0 0.0
          %1986 = vmatprep.subr.mxu0 0.0
          %1987 = vmatpush1.msra.mxu0 0.0
          %1988 = vmatprep.subr.mxu0 0.0
          %1989 = vmatpush1.msra.mxu0 0.0
          %1990 = vmatprep.subr.mxu0 0.0
          %1991 = vmatpush1.msra.mxu0 0.0
          %1992 = vmatprep.subr.mxu0 0.0
          %1993 = vmatpush1.msra.mxu0 0.0
          %1994 = vmatprep.subr.mxu0 0.0
          %1995 = vmatpush1.msra.mxu0 0.0
          %1996 = vmatprep.subr.mxu0 0.0
          %1997 = vmatpush1.msra.mxu0 0.0
          %1998 = vmatprep.subr.mxu0 0.0
          %1999 = vmatpush1.msra.mxu0 0.0
          %2000 = vmatprep.subr.mxu0 0.0
          %2001 = vmatpush1.msra.mxu0 0.0
          %2002 = vmatprep.subr.mxu0 0.0
          %2003 = vmatpush1.msra.mxu0 0.0
          %2004 = vmatprep.subr.mxu0 0.0
          %2005 = vmatpush1.msra.mxu0 0.0
          %2006 = vmatprep.subr.mxu0 0.0
          %2007 = vmatpush1.msra.mxu0 0.0
          %2008 = vmatprep.subr.mxu0 0.0
          %2009 = vmatpush1.msra.mxu0 0.0
          %2010 = vmatprep.subr.mxu0 0.0
          %2011 = vmatpush1.msra.mxu0 0.0
          %2012 = vmatprep.subr.mxu0 0.0
          %2013 = vmatpush1.msra.mxu0 0.0
          %2014 = vmatprep.subr.mxu0 0.0
          %2015 = vmatpush1.msra.mxu0 0.0
          %2016 = vmatprep.subr.mxu0 0.0
          %2017 = vmatpush1.msra.mxu0 0.0
          %2018 = vmatprep.subr.mxu0 0.0
          %2019 = vmatpush1.msra.mxu0 0.0
          %2020 = vmatprep.subr.mxu0 0.0
          %2021 = vmatpush1.msra.mxu0 0.0
          %2022 = vmatprep.subr.mxu0 0.0
          %2023 = vmatpush1.msra.mxu0 0.0
          %2024 = vmatprep.subr.mxu0 0.0
          %2025 = vmatpush1.msra.mxu0 0.0
          %2026 = vmatprep.mubr.f32.mxu0 0.0
          %2027 = vmatmul.mubr.f32.gmra.mrb[0].mxu0 %v1719
          %v2028 = vpop.f32.mrb[0].mxu0
          %v2029 = vadd.f32 0.0, %v2028
          %v2030 = vpop.f32.mrb[0].mxu0
          %v2031 = vadd.f32 0.0, %v2030
          %2032 = vdwg.mxu0
          %2033 = vmatprep.subr.mxu0 %v1725
          %2034 = vmatpush1.msra.mxu0 %v1722
          %2035 = vmatprep.subr.mxu0 0.0
          %2036 = vmatpush1.msra.mxu0 0.0
          %2037 = vmatprep.subr.mxu0 0.0
          %2038 = vmatpush1.msra.mxu0 0.0
          %2039 = vmatprep.subr.mxu0 0.0
          %2040 = vmatpush1.msra.mxu0 0.0
          %2041 = vmatprep.subr.mxu0 0.0
          %2042 = vmatpush1.msra.mxu0 0.0
          %2043 = vmatprep.subr.mxu0 0.0
          %2044 = vmatpush1.msra.mxu0 0.0
          %2045 = vmatprep.subr.mxu0 0.0
          %2046 = vmatpush1.msra.mxu0 0.0
          %2047 = vmatprep.subr.mxu0 0.0
          %2048 = vmatpush1.msra.mxu0 0.0
          %2049 = vmatprep.subr.mxu0 0.0
          %2050 = vmatpush1.msra.mxu0 0.0
          %2051 = vmatprep.subr.mxu0 0.0
          %2052 = vmatpush1.msra.mxu0 0.0
          %2053 = vmatprep.subr.mxu0 0.0
          %2054 = vmatpush1.msra.mxu0 0.0
          %2055 = vmatprep.subr.mxu0 0.0
          %2056 = vmatpush1.msra.mxu0 0.0
          %2057 = vmatprep.subr.mxu0 0.0
          %2058 = vmatpush1.msra.mxu0 0.0
          %2059 = vmatprep.subr.mxu0 0.0
          %2060 = vmatpush1.msra.mxu0 0.0
          %2061 = vmatprep.subr.mxu0 0.0
          %2062 = vmatpush1.msra.mxu0 0.0
          %2063 = vmatprep.subr.mxu0 0.0
          %2064 = vmatpush1.msra.mxu0 0.0
          %2065 = vmatprep.subr.mxu0 0.0
          %2066 = vmatpush1.msra.mxu0 0.0
          %2067 = vmatprep.subr.mxu0 0.0
          %2068 = vmatpush1.msra.mxu0 0.0
          %2069 = vmatprep.subr.mxu0 0.0
          %2070 = vmatpush1.msra.mxu0 0.0
          %2071 = vmatprep.subr.mxu0 0.0
          %2072 = vmatpush1.msra.mxu0 0.0
          %2073 = vmatprep.subr.mxu0 0.0
          %2074 = vmatpush1.msra.mxu0 0.0
          %2075 = vmatprep.subr.mxu0 0.0
          %2076 = vmatpush1.msra.mxu0 0.0
          %2077 = vmatprep.subr.mxu0 0.0
          %2078 = vmatpush1.msra.mxu0 0.0
          %2079 = vmatprep.subr.mxu0 0.0
          %2080 = vmatpush1.msra.mxu0 0.0
          %2081 = vmatprep.subr.mxu0 0.0
          %2082 = vmatpush1.msra.mxu0 0.0
          %2083 = vmatprep.subr.mxu0 0.0
          %2084 = vmatpush1.msra.mxu0 0.0
          %2085 = vmatprep.subr.mxu0 0.0
          %2086 = vmatpush1.msra.mxu0 0.0
          %2087 = vmatprep.subr.mxu0 0.0
          %2088 = vmatpush1.msra.mxu0 0.0
          %2089 = vmatprep.subr.mxu0 0.0
          %2090 = vmatpush1.msra.mxu0 0.0
          %2091 = vmatprep.subr.mxu0 0.0
          %2092 = vmatpush1.msra.mxu0 0.0
          %2093 = vmatprep.subr.mxu0 0.0
          %2094 = vmatpush1.msra.mxu0 0.0
          %2095 = vmatprep.subr.mxu0 0.0
          %2096 = vmatpush1.msra.mxu0 0.0
          %2097 = vmatprep.mubr.f32.mxu0 0.0
          %2098 = vmatmul.mubr.f32.gmra.mrb[0].mxu0 %v1799
          %v2099 = vpop.f32.mrb[0].mxu0
          %v2100 = vadd.f32 %v2029, %v2099
          %v2101 = vpop.f32.mrb[0].mxu0
          %v2102 = vadd.f32 %v2031, %v2101
          %2103 = vdwg.mxu0
          %2104 = vrot.lane.b32.xlu0 %v1699, 127
          %v2105 = vpop.permute.xlu0 %2104
          %2106 = vrot.lane.b32.xlu0 %v1700, 127
          %v2107 = vpop.permute.xlu0 %2106
          %v2108 = vsel %vm1454, %v2105, %v2107
          %v2109 = vsel %vm1454, %v2107, %v2105
          %v2111 = vsel %vm670, %v2108, 0
          %v2114 = vsel %vm670, %v2109, 0
          %2116 = vmatprep.subr.mxu0 %v2114
          %2117 = vmatpush1.msra.mxu0 %v2111
          %2118 = vmatprep.subr.mxu0 0.0
          %2119 = vmatpush1.msra.mxu0 0.0
          %2120 = vmatprep.subr.mxu0 0.0
          %2121 = vmatpush1.msra.mxu0 0.0
          %2122 = vmatprep.subr.mxu0 0.0
          %2123 = vmatpush1.msra.mxu0 0.0
          %2124 = vmatprep.subr.mxu0 0.0
          %2125 = vmatpush1.msra.mxu0 0.0
          %2126 = vmatprep.subr.mxu0 0.0
          %2127 = vmatpush1.msra.mxu0 0.0
          %2128 = vmatprep.subr.mxu0 0.0
          %2129 = vmatpush1.msra.mxu0 0.0
          %2130 = vmatprep.subr.mxu0 0.0
          %2131 = vmatpush1.msra.mxu0 0.0
          %2132 = vmatprep.subr.mxu0 0.0
          %2133 = vmatpush1.msra.mxu0 0.0
          %2134 = vmatprep.subr.mxu0 0.0
          %2135 = vmatpush1.msra.mxu0 0.0
          %2136 = vmatprep.subr.mxu0 0.0
          %2137 = vmatpush1.msra.mxu0 0.0
          %2138 = vmatprep.subr.mxu0 0.0
          %2139 = vmatpush1.msra.mxu0 0.0
          %2140 = vmatprep.subr.mxu0 0.0
          %2141 = vmatpush1.msra.mxu0 0.0
          %2142 = vmatprep.subr.mxu0 0.0
          %2143 = vmatpush1.msra.mxu0 0.0
          %2144 = vmatprep.subr.mxu0 0.0
          %2145 = vmatpush1.msra.mxu0 0.0
          %2146 = vmatprep.subr.mxu0 0.0
          %2147 = vmatpush1.msra.mxu0 0.0
          %2148 = vmatprep.subr.mxu0 0.0
          %2149 = vmatpush1.msra.mxu0 0.0
          %2150 = vmatprep.subr.mxu0 0.0
          %2151 = vmatpush1.msra.mxu0 0.0
          %2152 = vmatprep.subr.mxu0 0.0
          %2153 = vmatpush1.msra.mxu0 0.0
          %2154 = vmatprep.subr.mxu0 0.0
          %2155 = vmatpush1.msra.mxu0 0.0
          %2156 = vmatprep.subr.mxu0 0.0
          %2157 = vmatpush1.msra.mxu0 0.0
          %2158 = vmatprep.subr.mxu0 0.0
          %2159 = vmatpush1.msra.mxu0 0.0
          %2160 = vmatprep.subr.mxu0 0.0
          %2161 = vmatpush1.msra.mxu0 0.0
          %2162 = vmatprep.subr.mxu0 0.0
          %2163 = vmatpush1.msra.mxu0 0.0
          %2164 = vmatprep.subr.mxu0 0.0
          %2165 = vmatpush1.msra.mxu0 0.0
          %2166 = vmatprep.subr.mxu0 0.0
          %2167 = vmatpush1.msra.mxu0 0.0
          %2168 = vmatprep.subr.mxu0 0.0
          %2169 = vmatpush1.msra.mxu0 0.0
          %2170 = vmatprep.subr.mxu0 0.0
          %2171 = vmatpush1.msra.mxu0 0.0
          %2172 = vmatprep.subr.mxu0 0.0
          %2173 = vmatpush1.msra.mxu0 0.0
          %2174 = vmatprep.subr.mxu0 0.0
          %2175 = vmatpush1.msra.mxu0 0.0
          %2176 = vmatprep.subr.mxu0 0.0
          %2177 = vmatpush1.msra.mxu0 0.0
          %2178 = vmatprep.subr.mxu0 0.0
          %2179 = vmatpush1.msra.mxu0 0.0
          %2180 = vmatprep.mubr.f32.mxu0 0.0
          %2181 = vmatmul.mubr.f32.gmra.mrb[0].mxu0 %v1881
          %v2182 = vpop.f32.mrb[0].mxu0
          %v2183 = vadd.f32 0.0, %v2182
          %v2184 = vpop.f32.mrb[0].mxu0
          %v2185 = vadd.f32 0.0, %v2184
          %2186 = vdwg.mxu0
          %v2187 = vadd.f32 %v2100, %v2183
          %v2188 = vadd.f32 %v2102, %v2185
          %p2189 = scmp.eq.s32.totalorder %s30, 1
          // Predicated region
          $region77: #{tpu_custom_call.1} parent=75 // pred_check
            %p2190 = pneg %p2189
          $region78: #{tpu_custom_call.1} parent=75 // pred_check_branch
            %2192 = sbr.rel (%p2190) target = $region80
          $region79: #{tpu_custom_call.1} parent=75 // pred_region
            %v2193 = vmul.f32 %v1960, %v482
            %v2194 = vmul.f32 %v1961, %v483
            %v2195 = vld [vmem:[#allocation4] sm:$0x3f]
            %vm2196 = vcmask 1045504
            %v2197 = vsel %vm2196, %v2193, 0.0
            %v2198 = vsel %vm2196, %v2194, 0.0
            %v2199 = vadd.f32 %v2197, %v2198
            %2200 = vadd.xlane.f32.xlu0 %v2199
            %v2201 = vpop.xlane.xlu0 %2200
            %v2202 = vadd.f32 %v2195, %v2201
            %vm2203 = vcmask 5120
            %2204 = vst.msk [vmem:[#allocation4] sm:$0x3f] %vm2203, %v2202
            %v2205 = vld [vmem:[#allocation5] sm:$0x3f]
            %v2206 = vmul.f32 %v2193, %v2193
            %v2207 = vmul.f32 %v2194, %v2194
            %v2208 = vsel %vm2196, %v2206, 0.0
            %v2209 = vsel %vm2196, %v2207, 0.0
            %v2210 = vadd.f32 %v2208, %v2209
            %2211 = vadd.xlane.f32.xlu0 %v2210
            %v2212 = vpop.xlane.xlu0 %2211
            %v2213 = vadd.f32 %v2205, %v2212
            %2214 = vst.msk [vmem:[#allocation5] sm:$0x3f] %vm2203, %v2213
            %v2215 = vmul.f32 %v2187, %v482
            %v2216 = vmul.f32 %v2188, %v483
            %v2217 = vld [vmem:[#allocation4] sm:$0x3f]
            %v2218 = vsel %vm2196, %v2215, 0.0
            %v2219 = vsel %vm2196, %v2216, 0.0
            %v2220 = vadd.f32 %v2218, %v2219
            %2221 = vadd.xlane.f32.xlu0 %v2220
            %v2222 = vpop.xlane.xlu0 %2221
            %v2223 = vadd.f32 %v2217, %v2222
            %2224 = vst.msk [vmem:[#allocation4] sm:$0x3f] %vm2203, %v2223
            %v2225 = vld [vmem:[#allocation5] sm:$0x3f]
            %v2226 = vmul.f32 %v2215, %v2215
            %v2227 = vmul.f32 %v2216, %v2216
            %v2228 = vsel %vm2196, %v2226, 0.0
            %v2229 = vsel %vm2196, %v2227, 0.0
            %v2230 = vadd.f32 %v2228, %v2229
            %2231 = vadd.xlane.f32.xlu0 %v2230
            %v2232 = vpop.xlane.xlu0 %2231
            %v2233 = vadd.f32 %v2225, %v2232
            %2234 = vst.msk [vmem:[#allocation5] sm:$0x3f] %vm2203, %v2233
          $region80: #{tpu_custom_call.1} parent=75 // pred_fallthru
            _
          %p2235 = scmp.eq.s32.totalorder %s30, 2
          // Predicated region
          $region81: #{tpu_custom_call.1} parent=75 // pred_check
            %p2236 = pneg %p2235
          $region82: #{tpu_custom_call.1} parent=75 // pred_check_branch
            %2238 = sbr.rel (%p2236) target = $region84
          $region83: #{tpu_custom_call.1} parent=75 // pred_region
            %v2239 = vld [vmem:[#allocation4] sm:$0x3f]
            %v2240 = vmul.f32 %v2239, 0.03125
            %v2241 = vld [vmem:[#allocation5] sm:$0x3f]
            %v2242 = vmul.f32 %v2241, 0.03125
            %v2243 = vmul.f32 %v2240, %v2240
            %v2244 = vsub.f32 %v2242, %v2243
            %v2245 = vld [vmem:[%s8] sm:$0x3f]
            %v2246 = vadd.f32 %v2244, 1e-05
            %v2247 = vrsqrt.pop %v2246
            %v2248 = vmul.f32 %v2245, %v2247
            %v2249 = vld [vmem:[%s9] sm:$0x3f]
            %v2250 = vmul.f32 %v2240, %v2248
            %v2251 = vsub.f32 %v2249, %v2250
            %2253 = vset.pattern.permute.xlu0 0
            %2254 = vperm.xlu0 %2253, %v2248
            %v2255 = vpop.permute.xlu0 %2254
            %v2257 = vmul.f32 %v1960, %v2255
            %v2258 = vmul.f32 %v1961, %v2255
            %2260 = vset.pattern.permute.xlu0 0
            %2261 = vperm.xlu0 %2260, %v2251
            %v2262 = vpop.permute.xlu0 %2261
            %v2264 = vadd.f32 %v2257, %v2262
            %v2265 = vadd.f32 %v2258, %v2262
            %v2266 = vmax.f32 %v2264, 0.0
            %v2267 = vmax.f32 %v2265, 0.0
            %2268 = vst [vmem:[#allocation9] sm:$0x3f] %v2266
            %2269 = vst [vmem:[#allocation9 + $0x8] sm:$0x3f] %v2267
            %v2270 = vmul.f32 %v2187, %v2255
            %v2271 = vmul.f32 %v2188, %v2255
            %v2272 = vadd.f32 %v2270, %v2262
            %v2273 = vadd.f32 %v2271, %v2262
            %v2274 = vmax.f32 %v2272, 0.0
            %v2275 = vmax.f32 %v2273, 0.0
            %2276 = vst [vmem:[#allocation10] sm:$0x3f] %v2274
            %2277 = vst [vmem:[#allocation10 + $0x8] sm:$0x3f] %v2275
          $region84: #{tpu_custom_call.1} parent=75 // pred_fallthru
            _
        $region76: #{tpu_custom_call.1} parent=59 // pred_fallthru
          _
        // Predicated region
        $region85: #{tpu_custom_call.1} parent=59 // pred_check
          %p2278 = pneg %p276
        $region86: #{tpu_custom_call.1} parent=59 // pred_check_branch
          %2280 = sbr.rel (%p2278) target = $region88
        $region87: #{tpu_custom_call.1} parent=59 // pred_region
          %s2281 = smul.u32 2, %s31
          %s2283 = ssub.s32 256, 256
          %2284 = vsyncadd [#allocation8], %s2283
          %s2285 = smul.addr %s2281, 128
          %s2286 = scalar_lea.hbm %s10, %s2285
          %s2288 = sshll.u32 [#allocation9], 4
          %s2289 = int_to_ptr.vmem [resolvable:$true] %s2288
          %2291 = dma.vmem_to_hbm [thread:$0]  %s2289, 256, %s2286, [#allocation8]
        $region88: #{tpu_custom_call.1} parent=59 // pred_fallthru
          _
        // Predicated region
        $region89: #{tpu_custom_call.1} parent=59 // pred_check
          %p2292 = pneg %p302
        $region90: #{tpu_custom_call.1} parent=59 // pred_check_branch
          %2294 = sbr.rel (%p2292) target = $region92
        $region91: #{tpu_custom_call.1} parent=59 // pred_region
          %s2295 = smul.u32 2, %s31
          %s2297 = ssub.s32 256, 256
          %2298 = vsyncadd [#allocation11], %s2297
          %s2299 = smul.addr %s2295, 128
          %s2300 = scalar_lea.hbm %s11, %s2299
          %s2302 = sshll.u32 [#allocation10], 4
          %s2303 = int_to_ptr.vmem [resolvable:$true] %s2302
          %2305 = dma.vmem_to_hbm [thread:$0]  %s2303, 256, %s2300, [#allocation11]
        $region92: #{tpu_custom_call.1} parent=59 // pred_fallthru
          _
        // Predicated region
        $region93: #{tpu_custom_call.1} parent=59 // pred_check
          %p2306 = pneg %p276
        $region94: #{tpu_custom_call.1} parent=59 // pred_check_branch
          %2308 = sbr.rel (%p2306) target = $region96
        $region95: #{tpu_custom_call.1} parent=59 // pred_region
          %2309 = dma.done [#allocation8], 256
        $region96: #{tpu_custom_call.1} parent=59 // pred_fallthru
          _
        // Predicated region
        $region97: #{tpu_custom_call.1} parent=59 // pred_check
          %p2310 = pneg %p302
        $region98: #{tpu_custom_call.1} parent=59 // pred_check_branch
          %2312 = sbr.rel (%p2310) target = $region100
        $region99: #{tpu_custom_call.1} parent=59 // pred_region
          %2313 = dma.done [#allocation11], 256
        $region100: #{tpu_custom_call.1} parent=59 // pred_fallthru
          _
      $region60: #{tpu_custom_call.1} parent=5 // pred_fallthru
        _
      %p2314 = scmp.le.s32.totalorder 2, %s21
      // Predicated region
      $region101: #{tpu_custom_call.1} parent=5 // pred_check
        %p2315 = pneg %p2314
      $region102: #{tpu_custom_call.1} parent=5 // pred_check_branch
        %2317 = sbr.rel (%p2315) target = $region104
      $region103: #{tpu_custom_call.1} parent=5 // pred_region
        %s2318 = ssub.s32 %s21, 2
      $region104: #{tpu_custom_call.1} parent=5 // pred_fallthru
        _
    $region6: #{tpu_custom_call.1} parent=1 // loop_footer
      %s25 = sadd.s32 1, %s21
    $region7: #{tpu_custom_call.1} parent=1 // loop_footer_branch
      %20 = sbr.rel target = $region3
    $region8: #{tpu_custom_call.1} parent=1 // loop_exit
      _
    %2319 = vsyncpa [#allocation7], 1
    %s2320 = scalar_lea.sflag [#allocation7], 1
    %2321 = vsyncpa %s2320, 1
    %2322 = vsyncpa [#allocation8], 1
    %s2323 = scalar_lea.sflag [#allocation8], 1
    %2324 = vsyncpa %s2323, 1
    %2325 = vsyncpa [#allocation11], 1

</llo_original>
